<compile_context>
chip_gen: v7x
topology: tpu7x:2x2x1
jax: 0.10.0
libtpu: 0.0.40
codegen_flags: <defaults>
</compile_context>

<pallas_src>
import functools

import jax
import jax.numpy as jnp
from jax.experimental import pallas as pl
from jax.experimental.pallas import tpu as pltpu

EPS = 1e-5  # nn.InstanceNorm2d default eps


# ---------------------------------------------------------------------------
# Pallas kernel: conv (as one matmul) + instance-norm + relu for `nb` samples
# ---------------------------------------------------------------------------
def _upconv_kernel(x_ref, w_ref, p_ref, pt_ref, g_ref, b_ref, o_ref, *,
                   ksize, cin, cout, ho, wo, relu):
    nb = x_ref.shape[0]
    xm = x_ref[...].astype(jnp.float32)        # (nb, Hp, Wp*Cin)  lane-dense, pre-padded
    bigw = w_ref[...].astype(jnp.float32)      # (K*K*Wo*Cin, Wo*Cout)  block-diag weight
    psum = p_ref[...]                          # (Wo*Cout, Cout)   per-channel sum matrix
    psum_t = pt_ref[...]                       # (Cout, Wo*Cout)   per-channel broadcast
    gamma_m = g_ref[...]                       # (1, Wo*Cout)      gamma tiled over Wo
    beta_m = b_ref[...]                        # (1, Wo*Cout)

    # ---- im2col on the W/C-merged layout: each conv tap is one big static slice ----
    cols = []
    for dh in range(ksize):
        for dw in range(ksize):
            sl = xm[:, dh:dh + ho, dw * cin:(dw + wo) * cin]     # (nb, Ho, Wo*Cin)
            cols.append(sl.reshape(nb * ho, wo * cin))
    patches = jnp.concatenate(cols, axis=-1)                     # (nb*Ho, K*K*Wo*Cin)

    # ---- convolution: one MXU matmul, output already in lane-dense (n*i, j*Cout+c) ----
    y = jnp.dot(patches, bigw, preferred_element_type=jnp.float32)   # (nb*Ho, Wo*Cout)
    y3 = y.reshape(nb, ho, wo * cout)

    # ---- per-sample, per-channel InstanceNorm (biased variance, eps inside rsqrt) ----
    inv_hw = 1.0 / float(ho * wo)
    row_sum = jnp.sum(y3, axis=1)                                             # (nb, Wo*Cout)
    mean = jnp.dot(row_sum, psum, preferred_element_type=jnp.float32) * inv_hw  # (nb, Cout)
    mean_m = jnp.dot(mean, psum_t, preferred_element_type=jnp.float32)          # (nb, Wo*Cout)
    cent = y3 - mean_m[:, None, :]
    var = jnp.dot(jnp.sum(cent * cent, axis=1), psum,
                  preferred_element_type=jnp.float32) * inv_hw                  # (nb, Cout)
    inv_std = jax.lax.rsqrt(var + EPS)
    inv_m = jnp.dot(inv_std, psum_t, preferred_element_type=jnp.float32)        # (nb, Wo*Cout)

    scale = inv_m * gamma_m                                                     # (nb, Wo*Cout)
    out = cent * scale[:, None, :] + beta_m[None, :, :]
    if relu:
        out = jnp.maximum(out, 0.0)
    o_ref[...] = out.astype(o_ref.dtype)       # lane-dense (nb, Ho, Wo*Cout) store


# ---------------------------------------------------------------------------
# Wrapper (PyTorch NCHW interface)
# ---------------------------------------------------------------------------
def upconv_block(x_nchw, w_hwio, gamma, beta, *, ksize=3, stride=1, relu=True,
                 batch_block=None):
    """UpConvBlock forward.  x_nchw: (N, Cin, H, W), w_hwio: (K, K, Cin, Cout),
    gamma/beta: (Cout,).  Matmul/VPU math in f32 (keep bf16 off the VPU path for v5e)."""
    assert stride == 1, "only stride == 1 implemented"  # TODO(synk): strided conv path
    n, cin, h, w = x_nchw.shape
    assert w_hwio.shape[:3] == (ksize, ksize, cin)
    cout = w_hwio.shape[3]
    p = ksize // 2
    hu, wu = 2 * h, 2 * w                       # nearest-neighbor x2 upsample
    hp, wp = hu + 2 * p, wu + 2 * p             # Conv2d 'SAME' zero padding
    ho = hu + 2 * p - ksize + 1
    wo = wu + 2 * p - ksize + 1

    # whole batch per step by default; pass batch_block = n // 2 to use both v7x TCs
    nb = n if batch_block is None else batch_block
    assert n % nb == 0

    # --- XLA-side layout plumbing on tiny tensors: NHWC, upsample, pad, merge W&C ---
    x = jnp.transpose(x_nchw, (0, 2, 3, 1))                      # NCHW -> NHWC
    x = jnp.repeat(jnp.repeat(x, 2, axis=1), 2, axis=2)          # nearest 2x
    x = jnp.pad(x, ((0, 0), (p, p), (p, p), (0, 0)))             # conv zero padding
    x = x.reshape(n, hp, wp * cin)                               # lane-dense input slab

    # --- block-diagonal expanded weight: conv == one matmul with lane-dense output ---
    eye = jnp.eye(wo, dtype=w_hwio.dtype)
    bigw = jnp.einsum('kic,jJ->kjiJc',
                      w_hwio.reshape(ksize * ksize, cin, cout), eye)
    bigw = bigw.reshape(ksize * ksize * wo * cin, wo * cout)

    # --- constant helpers for per-channel reductions / broadcasts on merged lanes ---
    psum = jnp.tile(jnp.eye(cout, dtype=jnp.float32), (wo, 1))   # (Wo*Cout, Cout)
    psum_t = psum.T                                              # (Cout, Wo*Cout)
    gamma_m = jnp.tile(gamma.reshape(1, cout).astype(jnp.float32), (1, wo))
    beta_m = jnp.tile(beta.reshape(1, cout).astype(jnp.float32), (1, wo))

    kernel = functools.partial(_upconv_kernel, ksize=ksize, cin=cin, cout=cout,
                               ho=ho, wo=wo, relu=relu)
    out = pl.pallas_call(
        kernel,
        out_shape=jax.ShapeDtypeStruct((n, ho, wo * cout), x_nchw.dtype),
        grid=(n // nb,),
        in_specs=[
            pl.BlockSpec((nb, hp, wp * cin), lambda b: (b, 0, 0)),
            pl.BlockSpec((ksize * ksize * wo * cin, wo * cout), lambda b: (0, 0)),
            pl.BlockSpec((wo * cout, cout), lambda b: (0, 0)),
            pl.BlockSpec((cout, wo * cout), lambda b: (0, 0)),
            pl.BlockSpec((1, wo * cout), lambda b: (0, 0)),
            pl.BlockSpec((1, wo * cout), lambda b: (0, 0)),
        ],
        out_specs=pl.BlockSpec((nb, ho, wo * cout), lambda b: (b, 0, 0)),
        compiler_params=pltpu.CompilerParams(dimension_semantics=("parallel",)),
    )(x, bigw, psum, psum_t, gamma_m, beta_m)

    out = out.reshape(n, ho, wo, cout)
    return jnp.transpose(out, (0, 3, 1, 2))                      # NHWC -> NCHW


# ---------------------------------------------------------------------------
# Pure-JAX reference (mirrors the PyTorch forward) for verification
# ---------------------------------------------------------------------------
def upconv_block_ref(x_nchw, w_hwio, gamma, beta, *, ksize=3, stride=1, relu=True):
    p = ksize // 2
    x = jnp.transpose(x_nchw, (0, 2, 3, 1))
    x = jnp.repeat(jnp.repeat(x, 2, axis=1), 2, axis=2)          # F.interpolate nearest 2x
    y = jax.lax.conv_general_dilated(
        x, w_hwio, window_strides=(stride, stride), padding=[(p, p), (p, p)],
        dimension_numbers=("NHWC", "HWIO", "NHWC"),
        precision=jax.lax.Precision.HIGHEST)
    mean = jnp.mean(y, axis=(1, 2), keepdims=True)
    var = jnp.mean((y - mean) ** 2, axis=(1, 2), keepdims=True)
    y = (y - mean) * jax.lax.rsqrt(var + EPS)
    y = y * gamma.reshape(1, 1, 1, -1) + beta.reshape(1, 1, 1, -1)
    if relu:
        y = jnp.maximum(y, 0.0)
    return jnp.transpose(y, (0, 3, 1, 2))


if __name__ == "__main__":
    # UpConvBlock(in_channels=4, out_channels=4, kernel_size=3, stride=1, relu=True)
    N, CIN, COUT, H, W, K = 2, 4, 4, 16, 16, 3

    key = jax.random.PRNGKey(0)
    kx, kw, kg, kb = jax.random.split(key, 4)

    x = jax.random.normal(kx, (N, CIN, H, W), dtype=jnp.float32)
    # Conv2d weight (bias=False). PyTorch layout is (Cout, Cin, K, K); built here in HWIO.
    w = jax.random.normal(kw, (K, K, CIN, COUT), dtype=jnp.float32) * 0.2
    # InstanceNorm2d(affine=True) params (PyTorch inits to 1/0; perturbed to exercise affine).
    gamma = 1.0 + 0.1 * jax.random.normal(kg, (COUT,), dtype=jnp.float32)
    beta = 0.1 * jax.random.normal(kb, (COUT,), dtype=jnp.float32)

    out = upconv_block(x, w, gamma, beta, ksize=K, stride=1, relu=True)
    out = jax.block_until_ready(out)

    ref = upconv_block_ref(x, w, gamma, beta, ksize=K, stride=1, relu=True)
    ref = jax.block_until_ready(ref)

    assert out.shape == (N, COUT, 2 * H, 2 * W)
    assert jnp.allclose(out, ref, rtol=1e-3, atol=1e-3)

    print("KERNEL_OK")
</pallas_src>

<mosaic_0001>
module attributes {stable_mosaic.version = 11 : i64} {
  func.func @_upconv_kernel(%arg0: i32, %arg1: memref<2x34x136xf32, #tpu.memory_space<vmem>>, %arg2: memref<1152x128xf32, #tpu.memory_space<vmem>>, %arg3: memref<128x4xf32, #tpu.memory_space<vmem>>, %arg4: memref<4x128xf32, #tpu.memory_space<vmem>>, %arg5: memref<1x128xf32, #tpu.memory_space<vmem>>, %arg6: memref<1x128xf32, #tpu.memory_space<vmem>>, %arg7: memref<2x32x128xf32, #tpu.memory_space<vmem>>) attributes {dimension_semantics = [#tpu.dimension_semantics<parallel>], iteration_bounds = array<i64: 1>, scalar_prefetch = 0 : i64, scratch_operands = 0 : i64, tpu.core_type = #tpu.core_type<tc>, window_params = [{transform_indices = @transform_0, window_bounds = array<i64: 2, 34, 136>}, {pipeline_mode = #tpu.pipeline_mode<synchronous>, transform_indices = @transform_1, window_bounds = array<i64: 1152, 128>}, {pipeline_mode = #tpu.pipeline_mode<synchronous>, transform_indices = @transform_2, window_bounds = array<i64: 128, 4>}, {pipeline_mode = #tpu.pipeline_mode<synchronous>, transform_indices = @transform_3, window_bounds = array<i64: 4, 128>}, {pipeline_mode = #tpu.pipeline_mode<synchronous>, transform_indices = @transform_4, window_bounds = array<i64: 1, 128>}, {pipeline_mode = #tpu.pipeline_mode<synchronous>, transform_indices = @transform_5, window_bounds = array<i64: 1, 128>}, {transform_indices = @transform_6, window_bounds = array<i64: 2, 32, 128>}]} {
    %c0 = arith.constant 0 : index
    %c0_0 = arith.constant 0 : index
    %c0_1 = arith.constant 0 : index
    %0 = vector.load %arg1[%c0, %c0_0, %c0_1] : memref<2x34x136xf32, #tpu.memory_space<vmem>>, vector<2x34x136xf32>
    %c0_2 = arith.constant 0 : index
    %c0_3 = arith.constant 0 : index
    %1 = vector.load %arg2[%c0_2, %c0_3] : memref<1152x128xf32, #tpu.memory_space<vmem>>, vector<1152x128xf32>
    %c0_4 = arith.constant 0 : index
    %c0_5 = arith.constant 0 : index
    %2 = vector.load %arg3[%c0_4, %c0_5] : memref<128x4xf32, #tpu.memory_space<vmem>>, vector<128x4xf32>
    %c0_6 = arith.constant 0 : index
    %c0_7 = arith.constant 0 : index
    %3 = vector.load %arg4[%c0_6, %c0_7] : memref<4x128xf32, #tpu.memory_space<vmem>>, vector<4x128xf32>
    %c0_8 = arith.constant 0 : index
    %c0_9 = arith.constant 0 : index
    %4 = vector.load %arg5[%c0_8, %c0_9] : memref<1x128xf32, #tpu.memory_space<vmem>>, vector<1x128xf32>
    %c0_10 = arith.constant 0 : index
    %c0_11 = arith.constant 0 : index
    %5 = vector.load %arg6[%c0_10, %c0_11] : memref<1x128xf32, #tpu.memory_space<vmem>>, vector<1x128xf32>
    %6 = vector.extract_strided_slice %0 {offsets = [0, 0, 0], sizes = [2, 32, 128], strides = [1, 1, 1]} : vector<2x34x136xf32> to vector<2x32x128xf32>
    %7 = vector.shape_cast %6 : vector<2x32x128xf32> to vector<64x128xf32>
    %8 = vector.extract_strided_slice %0 {offsets = [0, 0, 4], sizes = [2, 32, 128], strides = [1, 1, 1]} : vector<2x34x136xf32> to vector<2x32x128xf32>
    %9 = vector.shape_cast %8 : vector<2x32x128xf32> to vector<64x128xf32>
    %10 = vector.extract_strided_slice %0 {offsets = [0, 0, 8], sizes = [2, 32, 128], strides = [1, 1, 1]} : vector<2x34x136xf32> to vector<2x32x128xf32>
    %11 = vector.shape_cast %10 : vector<2x32x128xf32> to vector<64x128xf32>
    %12 = vector.extract_strided_slice %0 {offsets = [0, 1, 0], sizes = [2, 32, 128], strides = [1, 1, 1]} : vector<2x34x136xf32> to vector<2x32x128xf32>
    %13 = vector.shape_cast %12 : vector<2x32x128xf32> to vector<64x128xf32>
    %14 = vector.extract_strided_slice %0 {offsets = [0, 1, 4], sizes = [2, 32, 128], strides = [1, 1, 1]} : vector<2x34x136xf32> to vector<2x32x128xf32>
    %15 = vector.shape_cast %14 : vector<2x32x128xf32> to vector<64x128xf32>
    %16 = vector.extract_strided_slice %0 {offsets = [0, 1, 8], sizes = [2, 32, 128], strides = [1, 1, 1]} : vector<2x34x136xf32> to vector<2x32x128xf32>
    %17 = vector.shape_cast %16 : vector<2x32x128xf32> to vector<64x128xf32>
    %18 = vector.extract_strided_slice %0 {offsets = [0, 2, 0], sizes = [2, 32, 128], strides = [1, 1, 1]} : vector<2x34x136xf32> to vector<2x32x128xf32>
    %19 = vector.shape_cast %18 : vector<2x32x128xf32> to vector<64x128xf32>
    %20 = vector.extract_strided_slice %0 {offsets = [0, 2, 4], sizes = [2, 32, 128], strides = [1, 1, 1]} : vector<2x34x136xf32> to vector<2x32x128xf32>
    %21 = vector.shape_cast %20 : vector<2x32x128xf32> to vector<64x128xf32>
    %22 = vector.extract_strided_slice %0 {offsets = [0, 2, 8], sizes = [2, 32, 128], strides = [1, 1, 1]} : vector<2x34x136xf32> to vector<2x32x128xf32>
    %23 = vector.shape_cast %22 : vector<2x32x128xf32> to vector<64x128xf32>
    %24 = tpu.concatenate %7, %9, %11, %13, %15, %17, %19, %21, %23 in 1 : vector<64x128xf32>, vector<64x128xf32>, vector<64x128xf32>, vector<64x128xf32>, vector<64x128xf32>, vector<64x128xf32>, vector<64x128xf32>, vector<64x128xf32>, vector<64x128xf32> -> vector<64x1152xf32>
    %cst = arith.constant dense<0.000000e+00> : vector<64x128xf32>
    %25 = tpu.matmul %24, %1, %cst {dimension_numbers = #tpu.dot_dimension_numbers<[1], [0], [0], [1], [0, 0, 1, 1], [], []>} : vector<64x1152xf32>, vector<1152x128xf32>, vector<64x128xf32> -> vector<64x128xf32>
    %26 = vector.shape_cast %25 : vector<64x128xf32> to vector<2x32x128xf32>
    %cst_12 = arith.constant dense<0.000000e+00> : vector<2x128xf32>
    %27 = vector.multi_reduction <add>, %26, %cst_12 [1] : vector<2x32x128xf32> to vector<2x128xf32>
    %cst_13 = arith.constant dense<0.000000e+00> : vector<2x4xf32>
    %28 = tpu.matmul %27, %2, %cst_13 {dimension_numbers = #tpu.dot_dimension_numbers<[1], [0], [0], [1], [0, 0, 1, 1], [], []>} : vector<2x128xf32>, vector<128x4xf32>, vector<2x4xf32> -> vector<2x4xf32>
    %cst_14 = arith.constant 9.765625E-4 : f32
    %29 = vector.broadcast %cst_14 : f32 to vector<2x4xf32>
    %30 = arith.mulf %28, %29 : vector<2x4xf32>
    %cst_15 = arith.constant dense<0.000000e+00> : vector<2x128xf32>
    %31 = tpu.matmul %30, %3, %cst_15 {dimension_numbers = #tpu.dot_dimension_numbers<[1], [0], [0], [1], [0, 0, 1, 1], [], []>} : vector<2x4xf32>, vector<4x128xf32>, vector<2x128xf32> -> vector<2x128xf32>
    %32 = vector.shape_cast %31 : vector<2x128xf32> to vector<2x1x128xf32>
    %33 = vector.broadcast %32 : vector<2x1x128xf32> to vector<2x32x128xf32>
    %34 = arith.subf %26, %33 : vector<2x32x128xf32>
    %35 = arith.mulf %34, %34 : vector<2x32x128xf32>
    %cst_16 = arith.constant dense<0.000000e+00> : vector<2x128xf32>
    %36 = vector.multi_reduction <add>, %35, %cst_16 [1] : vector<2x32x128xf32> to vector<2x128xf32>
    %cst_17 = arith.constant dense<0.000000e+00> : vector<2x4xf32>
    %37 = tpu.matmul %36, %2, %cst_17 {dimension_numbers = #tpu.dot_dimension_numbers<[1], [0], [0], [1], [0, 0, 1, 1], [], []>} : vector<2x128xf32>, vector<128x4xf32>, vector<2x4xf32> -> vector<2x4xf32>
    %cst_18 = arith.constant 9.765625E-4 : f32
    %38 = vector.broadcast %cst_18 : f32 to vector<2x4xf32>
    %39 = arith.mulf %37, %38 : vector<2x4xf32>
    %cst_19 = arith.constant 9.99999974E-6 : f32
    %40 = vector.broadcast %cst_19 : f32 to vector<2x4xf32>
    %41 = arith.addf %39, %40 : vector<2x4xf32>
    %42 = math.rsqrt %41 : vector<2x4xf32>
    %cst_20 = arith.constant dense<0.000000e+00> : vector<2x128xf32>
    %43 = tpu.matmul %42, %3, %cst_20 {dimension_numbers = #tpu.dot_dimension_numbers<[1], [0], [0], [1], [0, 0, 1, 1], [], []>} : vector<2x4xf32>, vector<4x128xf32>, vector<2x128xf32> -> vector<2x128xf32>
    %44 = vector.broadcast %4 : vector<1x128xf32> to vector<2x128xf32>
    %45 = arith.mulf %43, %44 : vector<2x128xf32>
    %46 = vector.shape_cast %45 : vector<2x128xf32> to vector<2x1x128xf32>
    %47 = vector.broadcast %46 : vector<2x1x128xf32> to vector<2x32x128xf32>
    %48 = arith.mulf %34, %47 : vector<2x32x128xf32>
    %49 = vector.shape_cast %5 : vector<1x128xf32> to vector<1x1x128xf32>
    %50 = vector.broadcast %49 : vector<1x1x128xf32> to vector<2x32x128xf32>
    %51 = arith.addf %48, %50 : vector<2x32x128xf32>
    %cst_21 = arith.constant 0.000000e+00 : f32
    %52 = vector.broadcast %cst_21 : f32 to vector<2x32x128xf32>
    %53 = arith.maximumf %51, %52 : vector<2x32x128xf32>
    %c0_22 = arith.constant 0 : index
    %c0_23 = arith.constant 0 : index
    %c0_24 = arith.constant 0 : index
    %54 = vector.load %arg7[%c0_22, %c0_23, %c0_24] : memref<2x32x128xf32, #tpu.memory_space<vmem>>, vector<2x32x128xf32>
    tpu.vector_store %arg7[%c0_22, %c0_23, %c0_24], %53 {strides = array<i32>} : memref<2x32x128xf32, #tpu.memory_space<vmem>>, vector<2x32x128xf32>,
    return
  }
  func.func @transform_0(%arg0: i32) -> (i32, i32, i32) {
    %c0_i32 = arith.constant 0 : i32
    %c0_i32_0 = arith.constant 0 : i32
    %c0_i32_1 = arith.constant 0 : i32
    return %arg0, %c0_i32, %c0_i32_0 : i32, i32, i32
  }
  func.func @transform_1(%arg0: i32) -> (i32, i32) {
    %c0_i32 = arith.constant 0 : i32
    %c0_i32_0 = arith.constant 0 : i32
    %c0_i32_1 = arith.constant 0 : i32
    return %c0_i32, %c0_i32_0 : i32, i32
  }
  func.func @transform_2(%arg0: i32) -> (i32, i32) {
    %c0_i32 = arith.constant 0 : i32
    %c0_i32_0 = arith.constant 0 : i32
    %c0_i32_1 = arith.constant 0 : i32
    return %c0_i32, %c0_i32_0 : i32, i32
  }
  func.func @transform_3(%arg0: i32) -> (i32, i32) {
    %c0_i32 = arith.constant 0 : i32
    %c0_i32_0 = arith.constant 0 : i32
    %c0_i32_1 = arith.constant 0 : i32
    return %c0_i32, %c0_i32_0 : i32, i32
  }
  func.func @transform_4(%arg0: i32) -> (i32, i32) {
    %c0_i32 = arith.constant 0 : i32
    %c0_i32_0 = arith.constant 0 : i32
    %c0_i32_1 = arith.constant 0 : i32
    return %c0_i32, %c0_i32_0 : i32, i32
  }
  func.func @transform_5(%arg0: i32) -> (i32, i32) {
    %c0_i32 = arith.constant 0 : i32
    %c0_i32_0 = arith.constant 0 : i32
    %c0_i32_1 = arith.constant 0 : i32
    return %c0_i32, %c0_i32_0 : i32, i32
  }
  func.func @transform_6(%arg0: i32) -> (i32, i32, i32) {
    %c0_i32 = arith.constant 0 : i32
    %c0_i32_0 = arith.constant 0 : i32
    %c0_i32_1 = arith.constant 0 : i32
    return %arg0, %c0_i32, %c0_i32_0 : i32, i32, i32
  }
}

</mosaic_0001>

<llo_original>
// kernel: tpu_custom_call.1
$region0: #{tpu_custom_call.1}
  #allocation0 [shape = 'u32[]', space=smem, size = 0x4, offset = 0x4, fixed_abs, tag = 'smem constant byte address 0x4 - core index']
  #allocation1 [shape = 'u32[144,128]{1,0:T(1,128)}', space=vmem, size = 0x12000, scoped, tag = 'internal scratch']
  %s0 = inlined_call_operand.vmem [shape: f32[2,34,136], index: 0, kind: input, shape index: {}]
  %s1 = inlined_call_operand.hbm [shape: f32[1152,128], index: 1, kind: input, shape index: {}]
  %s2 = inlined_call_operand.vmem [shape: f32[128,4], index: 2, kind: input, shape index: {}]
  %s3 = inlined_call_operand.vmem [shape: f32[4,128], index: 3, kind: input, shape index: {}]
  %s4 = inlined_call_operand.vmem [shape: f32[1,128], index: 4, kind: input, shape index: {}]
  %s5 = inlined_call_operand.vmem [shape: f32[1,128], index: 5, kind: input, shape index: {}]
  %s6 = inlined_call_operand.hbm [shape: f32[2,32,128], index: 6, kind: output, shape index: {}]
  %s7 = sld [smem:[#allocation0]]
  $region38: #{tpu_custom_call.1} parent=0
    _
  %s9 = ssub.s32 1, %s7
  %s10 = scalar_select 0, %s9, %s7
  $region1: #{tpu_custom_call.1} parent=0
    #allocation2 [shape = 'u8[589824]{0}', space=vmem, size = 0x90000, scoped, tag = 'input window, operand 1, single buffered']
    #allocation3 [shape = 's32[1]{0}', space=sflag, size = 0x4, scoped, tag = 'scoped memory for tpu_custom_call.1']
    #allocation4 [shape = 's32[1]{0}', space=sflag, size = 0x4, scoped, tag = 'scoped memory for tpu_custom_call.1']
    #allocation5 [shape = 'u8[32768]{0}', space=vmem, size = 0x8000, scoped, tag = 'output window, operand 0, single buffered']
    %11 = vsyncpa [#allocation3], 0
    %12 = vsyncpa [#allocation4], 0
    // Predicated region
    $region2: #{tpu_custom_call.1} parent=1 // pred_check
      _
    $region3: #{tpu_custom_call.1} parent=1 // pred_check_branch
      %14 = sbr.rel (0) target = $region5
    $region4: #{tpu_custom_call.1} parent=1 // pred_region
      _
    $region5: #{tpu_custom_call.1} parent=1 // pred_fallthru
      _
    // Predicated region
    $region6: #{tpu_custom_call.1} parent=1 // pred_check
      _
    $region7: #{tpu_custom_call.1} parent=1 // pred_check_branch
      %16 = sbr.rel (0) target = $region9
    $region8: #{tpu_custom_call.1} parent=1 // pred_region
      %s18 = ssub.s32 18432, 18432
      %19 = vsyncadd [#allocation3], %s18
      %s20 = sshll.u32 [#allocation2], 4
      %s21 = int_to_ptr.vmem [resolvable:$true] %s20
      %26 = dma.hbm_to_vmem [thread:$0]  %s1, 18432, %s21, [#allocation3], 128, 128, 8
    $region9: #{tpu_custom_call.1} parent=1 // pred_fallthru
      _
    // Predicated region
    $region10: #{tpu_custom_call.1} parent=1 // pred_check
      _
    $region11: #{tpu_custom_call.1} parent=1 // pred_check_branch
      %28 = sbr.rel (0) target = $region13
    $region12: #{tpu_custom_call.1} parent=1 // pred_region
      _
    $region13: #{tpu_custom_call.1} parent=1 // pred_fallthru
      _
    // Predicated region
    $region14: #{tpu_custom_call.1} parent=1 // pred_check
      _
    $region15: #{tpu_custom_call.1} parent=1 // pred_check_branch
      %30 = sbr.rel (0) target = $region17
    $region16: #{tpu_custom_call.1} parent=1 // pred_region
      _
    $region17: #{tpu_custom_call.1} parent=1 // pred_fallthru
      _
    // Predicated region
    $region18: #{tpu_custom_call.1} parent=1 // pred_check
      _
    $region19: #{tpu_custom_call.1} parent=1 // pred_check_branch
      %32 = sbr.rel (0) target = $region21
    $region20: #{tpu_custom_call.1} parent=1 // pred_region
      _
    $region21: #{tpu_custom_call.1} parent=1 // pred_fallthru
      _
    // Predicated region
    $region22: #{tpu_custom_call.1} parent=1 // pred_check
      _
    $region23: #{tpu_custom_call.1} parent=1 // pred_check_branch
      %34 = sbr.rel (0) target = $region25
    $region24: #{tpu_custom_call.1} parent=1 // pred_region
      _
    $region25: #{tpu_custom_call.1} parent=1 // pred_fallthru
      _
    // Predicated region
    $region26: #{tpu_custom_call.1} parent=1 // pred_check
      _
    $region27: #{tpu_custom_call.1} parent=1 // pred_check_branch
      %36 = sbr.rel (0) target = $region29
    $region28: #{tpu_custom_call.1} parent=1 // pred_region
      %37 = dma.done [#allocation3], 18432
    $region29: #{tpu_custom_call.1} parent=1 // pred_fallthru
      _
    %v38 = vld [vmem:[%s0] sm:$0xff]
    %v39 = vld [vmem:[%s0 + $0x8] sm:$0xff]
    %v40 = vld [vmem:[%s0 + $0x10] sm:$0xff]
    %v41 = vld [vmem:[%s0 + $0x18] sm:$0xff]
    %v42 = vld [vmem:[%s0 + $0x20] sm:$0xff]
    %v43 = vld [vmem:[%s0 + $0x28] sm:$0xff]
    %v44 = vld [vmem:[%s0 + $0x30] sm:$0xff]
    %v45 = vld [vmem:[%s0 + $0x38] sm:$0xff]
    %v46 = vld [vmem:[%s0 + $0x40] sm:$0x3]
    %v47 = vld [vmem:[%s0 + $0x48] sm:$0x3]
    %v48 = vld [vmem:[%s0 + $0x50] sm:$0xff]
    %v49 = vld [vmem:[%s0 + $0x58] sm:$0xff]
    %v50 = vld [vmem:[%s0 + $0x60] sm:$0xff]
    %v51 = vld [vmem:[%s0 + $0x68] sm:$0xff]
    %v52 = vld [vmem:[%s0 + $0x70] sm:$0xff]
    %v53 = vld [vmem:[%s0 + $0x78] sm:$0xff]
    %v54 = vld [vmem:[%s0 + $0x80] sm:$0xff]
    %v55 = vld [vmem:[%s0 + $0x88] sm:$0xff]
    %v56 = vld [vmem:[%s0 + $0x90] sm:$0x3]
    %v57 = vld [vmem:[%s0 + $0x98] sm:$0x3]
    %v58 = vld [vmem:[#allocation2] sm:$0xff]
    %v59 = vld [vmem:[#allocation2 + $0x8] sm:$0xff]
    %v60 = vld [vmem:[#allocation2 + $0x10] sm:$0xff]
    %v61 = vld [vmem:[#allocation2 + $0x18] sm:$0xff]
    %v62 = vld [vmem:[#allocation2 + $0x20] sm:$0xff]
    %v63 = vld [vmem:[#allocation2 + $0x28] sm:$0xff]
    %v64 = vld [vmem:[#allocation2 + $0x30] sm:$0xff]
    %v65 = vld [vmem:[#allocation2 + $0x38] sm:$0xff]
    %v66 = vld [vmem:[#allocation2 + $0x40] sm:$0xff]
    %v67 = vld [vmem:[#allocation2 + $0x48] sm:$0xff]
    %v68 = vld [vmem:[#allocation2 + $0x50] sm:$0xff]
    %v69 = vld [vmem:[#allocation2 + $0x58] sm:$0xff]
    %v70 = vld [vmem:[#allocation2 + $0x60] sm:$0xff]
    %v71 = vld [vmem:[#allocation2 + $0x68] sm:$0xff]
    %v72 = vld [vmem:[#allocation2 + $0x70] sm:$0xff]
    %v73 = vld [vmem:[#allocation2 + $0x78] sm:$0xff]
    %v74 = vld [vmem:[#allocation2 + $0x80] sm:$0xff]
    %v75 = vld [vmem:[#allocation2 + $0x88] sm:$0xff]
    %v76 = vld [vmem:[#allocation2 + $0x90] sm:$0xff]
    %v77 = vld [vmem:[#allocation2 + $0x98] sm:$0xff]
    %v78 = vld [vmem:[#allocation2 + $0xa0] sm:$0xff]
    %v79 = vld [vmem:[#allocation2 + $0xa8] sm:$0xff]
    %v80 = vld [vmem:[#allocation2 + $0xb0] sm:$0xff]
    %v81 = vld [vmem:[#allocation2 + $0xb8] sm:$0xff]
    %v82 = vld [vmem:[#allocation2 + $0xc0] sm:$0xff]
    %v83 = vld [vmem:[#allocation2 + $0xc8] sm:$0xff]
    %v84 = vld [vmem:[#allocation2 + $0xd0] sm:$0xff]
    %v85 = vld [vmem:[#allocation2 + $0xd8] sm:$0xff]
    %v86 = vld [vmem:[#allocation2 + $0xe0] sm:$0xff]
    %v87 = vld [vmem:[#allocation2 + $0xe8] sm:$0xff]
    %v88 = vld [vmem:[#allocation2 + $0xf0] sm:$0xff]
    %v89 = vld [vmem:[#allocation2 + $0xf8] sm:$0xff]
    %v90 = vld [vmem:[#allocation2 + $0x100] sm:$0xff]
    %v91 = vld [vmem:[#allocation2 + $0x108] sm:$0xff]
    %v92 = vld [vmem:[#allocation2 + $0x110] sm:$0xff]
    %v93 = vld [vmem:[#allocation2 + $0x118] sm:$0xff]
    %v94 = vld [vmem:[#allocation2 + $0x120] sm:$0xff]
    %v95 = vld [vmem:[#allocation2 + $0x128] sm:$0xff]
    %v96 = vld [vmem:[#allocation2 + $0x130] sm:$0xff]
    %v97 = vld [vmem:[#allocation2 + $0x138] sm:$0xff]
    %v98 = vld [vmem:[#allocation2 + $0x140] sm:$0xff]
    %v99 = vld [vmem:[#allocation2 + $0x148] sm:$0xff]
    %v100 = vld [vmem:[#allocation2 + $0x150] sm:$0xff]
    %v101 = vld [vmem:[#allocation2 + $0x158] sm:$0xff]
    %v102 = vld [vmem:[#allocation2 + $0x160] sm:$0xff]
    %v103 = vld [vmem:[#allocation2 + $0x168] sm:$0xff]
    %v104 = vld [vmem:[#allocation2 + $0x170] sm:$0xff]
    %v105 = vld [vmem:[#allocation2 + $0x178] sm:$0xff]
    %v106 = vld [vmem:[#allocation2 + $0x180] sm:$0xff]
    %v107 = vld [vmem:[#allocation2 + $0x188] sm:$0xff]
    %v108 = vld [vmem:[#allocation2 + $0x190] sm:$0xff]
    %v109 = vld [vmem:[#allocation2 + $0x198] sm:$0xff]
    %v110 = vld [vmem:[#allocation2 + $0x1a0] sm:$0xff]
    %v111 = vld [vmem:[#allocation2 + $0x1a8] sm:$0xff]
    %v112 = vld [vmem:[#allocation2 + $0x1b0] sm:$0xff]
    %v113 = vld [vmem:[#allocation2 + $0x1b8] sm:$0xff]
    %v114 = vld [vmem:[#allocation2 + $0x1c0] sm:$0xff]
    %v115 = vld [vmem:[#allocation2 + $0x1c8] sm:$0xff]
    %v116 = vld [vmem:[#allocation2 + $0x1d0] sm:$0xff]
    %v117 = vld [vmem:[#allocation2 + $0x1d8] sm:$0xff]
    %v118 = vld [vmem:[#allocation2 + $0x1e0] sm:$0xff]
    %v119 = vld [vmem:[#allocation2 + $0x1e8] sm:$0xff]
    %v120 = vld [vmem:[#allocation2 + $0x1f0] sm:$0xff]
    %v121 = vld [vmem:[#allocation2 + $0x1f8] sm:$0xff]
    %v122 = vld [vmem:[#allocation2 + $0x200] sm:$0xff]
    %v123 = vld [vmem:[#allocation2 + $0x208] sm:$0xff]
    %v124 = vld [vmem:[#allocation2 + $0x210] sm:$0xff]
    %v125 = vld [vmem:[#allocation2 + $0x218] sm:$0xff]
    %v126 = vld [vmem:[#allocation2 + $0x220] sm:$0xff]
    %v127 = vld [vmem:[#allocation2 + $0x228] sm:$0xff]
    %v128 = vld [vmem:[#allocation2 + $0x230] sm:$0xff]
    %v129 = vld [vmem:[#allocation2 + $0x238] sm:$0xff]
    %v130 = vld [vmem:[#allocation2 + $0x240] sm:$0xff]
    %v131 = vld [vmem:[#allocation2 + $0x248] sm:$0xff]
    %v132 = vld [vmem:[#allocation2 + $0x250] sm:$0xff]
    %v133 = vld [vmem:[#allocation2 + $0x258] sm:$0xff]
    %v134 = vld [vmem:[#allocation2 + $0x260] sm:$0xff]
    %v135 = vld [vmem:[#allocation2 + $0x268] sm:$0xff]
    %v136 = vld [vmem:[#allocation2 + $0x270] sm:$0xff]
    %v137 = vld [vmem:[#allocation2 + $0x278] sm:$0xff]
    %v138 = vld [vmem:[#allocation2 + $0x280] sm:$0xff]
    %v139 = vld [vmem:[#allocation2 + $0x288] sm:$0xff]
    %v140 = vld [vmem:[#allocation2 + $0x290] sm:$0xff]
    %v141 = vld [vmem:[#allocation2 + $0x298] sm:$0xff]
    %v142 = vld [vmem:[#allocation2 + $0x2a0] sm:$0xff]
    %v143 = vld [vmem:[#allocation2 + $0x2a8] sm:$0xff]
    %v144 = vld [vmem:[#allocation2 + $0x2b0] sm:$0xff]
    %v145 = vld [vmem:[#allocation2 + $0x2b8] sm:$0xff]
    %v146 = vld [vmem:[#allocation2 + $0x2c0] sm:$0xff]
    %v147 = vld [vmem:[#allocation2 + $0x2c8] sm:$0xff]
    %v148 = vld [vmem:[#allocation2 + $0x2d0] sm:$0xff]
    %v149 = vld [vmem:[#allocation2 + $0x2d8] sm:$0xff]
    %v150 = vld [vmem:[#allocation2 + $0x2e0] sm:$0xff]
    %v151 = vld [vmem:[#allocation2 + $0x2e8] sm:$0xff]
    %v152 = vld [vmem:[#allocation2 + $0x2f0] sm:$0xff]
    %v153 = vld [vmem:[#allocation2 + $0x2f8] sm:$0xff]
    %v154 = vld [vmem:[#allocation2 + $0x300] sm:$0xff]
    %v155 = vld [vmem:[#allocation2 + $0x308] sm:$0xff]
    %v156 = vld [vmem:[#allocation2 + $0x310] sm:$0xff]
    %v157 = vld [vmem:[#allocation2 + $0x318] sm:$0xff]
    %v158 = vld [vmem:[#allocation2 + $0x320] sm:$0xff]
    %v159 = vld [vmem:[#allocation2 + $0x328] sm:$0xff]
    %v160 = vld [vmem:[#allocation2 + $0x330] sm:$0xff]
    %v161 = vld [vmem:[#allocation2 + $0x338] sm:$0xff]
    %v162 = vld [vmem:[#allocation2 + $0x340] sm:$0xff]
    %v163 = vld [vmem:[#allocation2 + $0x348] sm:$0xff]
    %v164 = vld [vmem:[#allocation2 + $0x350] sm:$0xff]
    %v165 = vld [vmem:[#allocation2 + $0x358] sm:$0xff]
    %v166 = vld [vmem:[#allocation2 + $0x360] sm:$0xff]
    %v167 = vld [vmem:[#allocation2 + $0x368] sm:$0xff]
    %v168 = vld [vmem:[#allocation2 + $0x370] sm:$0xff]
    %v169 = vld [vmem:[#allocation2 + $0x378] sm:$0xff]
    %v170 = vld [vmem:[#allocation2 + $0x380] sm:$0xff]
    %v171 = vld [vmem:[#allocation2 + $0x388] sm:$0xff]
    %v172 = vld [vmem:[#allocation2 + $0x390] sm:$0xff]
    %v173 = vld [vmem:[#allocation2 + $0x398] sm:$0xff]
    %v174 = vld [vmem:[#allocation2 + $0x3a0] sm:$0xff]
    %v175 = vld [vmem:[#allocation2 + $0x3a8] sm:$0xff]
    %v176 = vld [vmem:[#allocation2 + $0x3b0] sm:$0xff]
    %v177 = vld [vmem:[#allocation2 + $0x3b8] sm:$0xff]
    %v178 = vld [vmem:[#allocation2 + $0x3c0] sm:$0xff]
    %v179 = vld [vmem:[#allocation2 + $0x3c8] sm:$0xff]
    %v180 = vld [vmem:[#allocation2 + $0x3d0] sm:$0xff]
    %v181 = vld [vmem:[#allocation2 + $0x3d8] sm:$0xff]
    %v182 = vld [vmem:[#allocation2 + $0x3e0] sm:$0xff]
    %v183 = vld [vmem:[#allocation2 + $0x3e8] sm:$0xff]
    %v184 = vld [vmem:[#allocation2 + $0x3f0] sm:$0xff]
    %v185 = vld [vmem:[#allocation2 + $0x3f8] sm:$0xff]
    %v186 = vld [vmem:[#allocation2 + $0x400] sm:$0xff]
    %v187 = vld [vmem:[#allocation2 + $0x408] sm:$0xff]
    %v188 = vld [vmem:[#allocation2 + $0x410] sm:$0xff]
    %v189 = vld [vmem:[#allocation2 + $0x418] sm:$0xff]
    %v190 = vld [vmem:[#allocation2 + $0x420] sm:$0xff]
    %v191 = vld [vmem:[#allocation2 + $0x428] sm:$0xff]
    %v192 = vld [vmem:[#allocation2 + $0x430] sm:$0xff]
    %v193 = vld [vmem:[#allocation2 + $0x438] sm:$0xff]
    %v194 = vld [vmem:[#allocation2 + $0x440] sm:$0xff]
    %v195 = vld [vmem:[#allocation2 + $0x448] sm:$0xff]
    %v196 = vld [vmem:[#allocation2 + $0x450] sm:$0xff]
    %v197 = vld [vmem:[#allocation2 + $0x458] sm:$0xff]
    %v198 = vld [vmem:[#allocation2 + $0x460] sm:$0xff]
    %v199 = vld [vmem:[#allocation2 + $0x468] sm:$0xff]
    %v200 = vld [vmem:[#allocation2 + $0x470] sm:$0xff]
    %v201 = vld [vmem:[#allocation2 + $0x478] sm:$0xff]
    %v202 = vld [vmem:[%s2] sm:$0xff]
    %v203 = vld [vmem:[%s2 + $0x8] sm:$0xff]
    %v204 = vld [vmem:[%s2 + $0x10] sm:$0xff]
    %v205 = vld [vmem:[%s2 + $0x18] sm:$0xff]
    %v206 = vld [vmem:[%s2 + $0x20] sm:$0xff]
    %v207 = vld [vmem:[%s2 + $0x28] sm:$0xff]
    %v208 = vld [vmem:[%s2 + $0x30] sm:$0xff]
    %v209 = vld [vmem:[%s2 + $0x38] sm:$0xff]
    %v210 = vld [vmem:[%s2 + $0x40] sm:$0xff]
    %v211 = vld [vmem:[%s2 + $0x48] sm:$0xff]
    %v212 = vld [vmem:[%s2 + $0x50] sm:$0xff]
    %v213 = vld [vmem:[%s2 + $0x58] sm:$0xff]
    %v214 = vld [vmem:[%s2 + $0x60] sm:$0xff]
    %v215 = vld [vmem:[%s2 + $0x68] sm:$0xff]
    %v216 = vld [vmem:[%s2 + $0x70] sm:$0xff]
    %v217 = vld [vmem:[%s2 + $0x78] sm:$0xff]
    %v218 = vld [vmem:[%s3] sm:$0xf]
    %v219 = vld [vmem:[%s4] sm:$0x1]
    %v220 = vld [vmem:[%s5] sm:$0x1]
    %vm231 = vcmask 1046528
    %v232 = vrot.slane %v38, 1
    %v233 = vrot.slane %v40, 1
    %v234 = vsel %vm231, %v232, %v233
    %v235 = vrot.slane %v42, 1
    %v236 = vsel %vm231, %v233, %v235
    %v237 = vrot.slane %v44, 1
    %v238 = vsel %vm231, %v235, %v237
    %v239 = vrot.slane %v46, 1
    %v240 = vsel %vm231, %v237, %v239
    %v241 = vrot.slane %v48, 1
    %v242 = vrot.slane %v50, 1
    %v243 = vsel %vm231, %v241, %v242
    %v244 = vrot.slane %v52, 1
    %v245 = vsel %vm231, %v242, %v244
    %v246 = vrot.slane %v54, 1
    %v247 = vsel %vm231, %v244, %v246
    %v248 = vrot.slane %v56, 1
    %v249 = vsel %vm231, %v246, %v248
    %v268 = vrot.slane %v39, 1
    %v269 = vrot.slane %v41, 1
    %v270 = vsel %vm231, %v268, %v269
    %v271 = vrot.slane %v43, 1
    %v272 = vsel %vm231, %v269, %v271
    %v273 = vrot.slane %v45, 1
    %v274 = vsel %vm231, %v271, %v273
    %v275 = vrot.slane %v47, 1
    %v276 = vsel %vm231, %v273, %v275
    %v277 = vrot.slane %v49, 1
    %v278 = vrot.slane %v51, 1
    %v279 = vsel %vm231, %v277, %v278
    %v280 = vrot.slane %v53, 1
    %v281 = vsel %vm231, %v278, %v280
    %v282 = vrot.slane %v55, 1
    %v283 = vsel %vm231, %v280, %v282
    %v284 = vrot.slane %v57, 1
    %v285 = vsel %vm231, %v282, %v284
    %vm286 = vcmask 1045504
    %v287 = vrot.slane %v38, 2
    %v288 = vrot.slane %v40, 2
    %v289 = vsel %vm286, %v287, %v288
    %v290 = vrot.slane %v42, 2
    %v291 = vsel %vm286, %v288, %v290
    %v292 = vrot.slane %v44, 2
    %v293 = vsel %vm286, %v290, %v292
    %v294 = vrot.slane %v46, 2
    %v295 = vsel %vm286, %v292, %v294
    %v296 = vrot.slane %v48, 2
    %v297 = vrot.slane %v50, 2
    %v298 = vsel %vm286, %v296, %v297
    %v299 = vrot.slane %v52, 2
    %v300 = vsel %vm286, %v297, %v299
    %v301 = vrot.slane %v54, 2
    %v302 = vsel %vm286, %v299, %v301
    %v303 = vrot.slane %v56, 2
    %v304 = vsel %vm286, %v301, %v303
    %v313 = vrot.slane %v39, 2
    %v314 = vrot.slane %v41, 2
    %v315 = vsel %vm286, %v313, %v314
    %v316 = vrot.slane %v43, 2
    %v317 = vsel %vm286, %v314, %v316
    %v318 = vrot.slane %v45, 2
    %v319 = vsel %vm286, %v316, %v318
    %v320 = vrot.slane %v47, 2
    %v321 = vsel %vm286, %v318, %v320
    %v322 = vrot.slane %v49, 2
    %v323 = vrot.slane %v51, 2
    %v324 = vsel %vm286, %v322, %v323
    %v325 = vrot.slane %v53, 2
    %v326 = vsel %vm286, %v323, %v325
    %v327 = vrot.slane %v55, 2
    %v328 = vsel %vm286, %v325, %v327
    %v329 = vrot.slane %v57, 2
    %v330 = vsel %vm286, %v327, %v329
    %331 = vrot.lane.b32.xlu0 %v38, 124
    %v332 = vpop.permute.xlu0 %331
    %333 = vrot.lane.b32.xlu0 %v39, 124
    %v334 = vpop.permute.xlu0 %333
    %335 = vrot.lane.b32.xlu0 %v40, 124
    %v336 = vpop.permute.xlu0 %335
    %337 = vrot.lane.b32.xlu0 %v41, 124
    %v338 = vpop.permute.xlu0 %337
    %339 = vrot.lane.b32.xlu0 %v42, 124
    %v340 = vpop.permute.xlu0 %339
    %341 = vrot.lane.b32.xlu0 %v43, 124
    %v342 = vpop.permute.xlu0 %341
    %343 = vrot.lane.b32.xlu0 %v44, 124
    %v344 = vpop.permute.xlu0 %343
    %345 = vrot.lane.b32.xlu0 %v45, 124
    %v346 = vpop.permute.xlu0 %345
    %347 = vrot.lane.b32.xlu0 %v48, 124
    %v348 = vpop.permute.xlu0 %347
    %349 = vrot.lane.b32.xlu0 %v49, 124
    %v350 = vpop.permute.xlu0 %349
    %351 = vrot.lane.b32.xlu0 %v50, 124
    %v352 = vpop.permute.xlu0 %351
    %353 = vrot.lane.b32.xlu0 %v51, 124
    %v354 = vpop.permute.xlu0 %353
    %355 = vrot.lane.b32.xlu0 %v52, 124
    %v356 = vpop.permute.xlu0 %355
    %357 = vrot.lane.b32.xlu0 %v53, 124
    %v358 = vpop.permute.xlu0 %357
    %359 = vrot.lane.b32.xlu0 %v54, 124
    %v360 = vpop.permute.xlu0 %359
    %361 = vrot.lane.b32.xlu0 %v55, 124
    %v362 = vpop.permute.xlu0 %361
    %vm363 = vcmask 1014784
    %v364 = vsel %vm363, %v332, %v334
    %v365 = vsel %vm363, %v336, %v338
    %v366 = vsel %vm363, %v340, %v342
    %v367 = vsel %vm363, %v344, %v346
    %v368 = vsel %vm363, %v348, %v350
    %v369 = vsel %vm363, %v352, %v354
    %v370 = vsel %vm363, %v356, %v358
    %v371 = vsel %vm363, %v360, %v362
    %380 = vrot.lane.b32.xlu0 %v38, 120
    %v381 = vpop.permute.xlu0 %380
    %382 = vrot.lane.b32.xlu0 %v39, 120
    %v383 = vpop.permute.xlu0 %382
    %384 = vrot.lane.b32.xlu0 %v40, 120
    %v385 = vpop.permute.xlu0 %384
    %386 = vrot.lane.b32.xlu0 %v41, 120
    %v387 = vpop.permute.xlu0 %386
    %388 = vrot.lane.b32.xlu0 %v42, 120
    %v389 = vpop.permute.xlu0 %388
    %390 = vrot.lane.b32.xlu0 %v43, 120
    %v391 = vpop.permute.xlu0 %390
    %392 = vrot.lane.b32.xlu0 %v44, 120
    %v393 = vpop.permute.xlu0 %392
    %394 = vrot.lane.b32.xlu0 %v45, 120
    %v395 = vpop.permute.xlu0 %394
    %396 = vrot.lane.b32.xlu0 %v48, 120
    %v397 = vpop.permute.xlu0 %396
    %398 = vrot.lane.b32.xlu0 %v49, 120
    %v399 = vpop.permute.xlu0 %398
    %400 = vrot.lane.b32.xlu0 %v50, 120
    %v401 = vpop.permute.xlu0 %400
    %402 = vrot.lane.b32.xlu0 %v51, 120
    %v403 = vpop.permute.xlu0 %402
    %404 = vrot.lane.b32.xlu0 %v52, 120
    %v405 = vpop.permute.xlu0 %404
    %406 = vrot.lane.b32.xlu0 %v53, 120
    %v407 = vpop.permute.xlu0 %406
    %408 = vrot.lane.b32.xlu0 %v54, 120
    %v409 = vpop.permute.xlu0 %408
    %410 = vrot.lane.b32.xlu0 %v55, 120
    %v411 = vpop.permute.xlu0 %410
    %vm412 = vcmask 982016
    %v413 = vsel %vm412, %v381, %v383
    %v414 = vsel %vm412, %v385, %v387
    %v415 = vsel %vm412, %v389, %v391
    %v416 = vsel %vm412, %v393, %v395
    %v417 = vsel %vm412, %v397, %v399
    %v418 = vsel %vm412, %v401, %v403
    %v419 = vsel %vm412, %v405, %v407
    %v420 = vsel %vm412, %v409, %v411
    %429 = vrot.lane.b32.xlu0 %v234, 124
    %v430 = vpop.permute.xlu0 %429
    %431 = vrot.lane.b32.xlu0 %v270, 124
    %v432 = vpop.permute.xlu0 %431
    %433 = vrot.lane.b32.xlu0 %v236, 124
    %v434 = vpop.permute.xlu0 %433
    %435 = vrot.lane.b32.xlu0 %v272, 124
    %v436 = vpop.permute.xlu0 %435
    %437 = vrot.lane.b32.xlu0 %v238, 124
    %v438 = vpop.permute.xlu0 %437
    %439 = vrot.lane.b32.xlu0 %v274, 124
    %v440 = vpop.permute.xlu0 %439
    %441 = vrot.lane.b32.xlu0 %v240, 124
    %v442 = vpop.permute.xlu0 %441
    %443 = vrot.lane.b32.xlu0 %v276, 124
    %v444 = vpop.permute.xlu0 %443
    %445 = vrot.lane.b32.xlu0 %v243, 124
    %v446 = vpop.permute.xlu0 %445
    %447 = vrot.lane.b32.xlu0 %v279, 124
    %v448 = vpop.permute.xlu0 %447
    %449 = vrot.lane.b32.xlu0 %v245, 124
    %v450 = vpop.permute.xlu0 %449
    %451 = vrot.lane.b32.xlu0 %v281, 124
    %v452 = vpop.permute.xlu0 %451
    %453 = vrot.lane.b32.xlu0 %v247, 124
    %v454 = vpop.permute.xlu0 %453
    %455 = vrot.lane.b32.xlu0 %v283, 124
    %v456 = vpop.permute.xlu0 %455
    %457 = vrot.lane.b32.xlu0 %v249, 124
    %v458 = vpop.permute.xlu0 %457
    %459 = vrot.lane.b32.xlu0 %v285, 124
    %v460 = vpop.permute.xlu0 %459
    %v461 = vsel %vm363, %v430, %v432
    %v462 = vsel %vm363, %v434, %v436
    %v463 = vsel %vm363, %v438, %v440
    %v464 = vsel %vm363, %v442, %v444
    %v465 = vsel %vm363, %v446, %v448
    %v466 = vsel %vm363, %v450, %v452
    %v467 = vsel %vm363, %v454, %v456
    %v468 = vsel %vm363, %v458, %v460
    %477 = vrot.lane.b32.xlu0 %v234, 120
    %v478 = vpop.permute.xlu0 %477
    %479 = vrot.lane.b32.xlu0 %v270, 120
    %v480 = vpop.permute.xlu0 %479
    %481 = vrot.lane.b32.xlu0 %v236, 120
    %v482 = vpop.permute.xlu0 %481
    %483 = vrot.lane.b32.xlu0 %v272, 120
    %v484 = vpop.permute.xlu0 %483
    %485 = vrot.lane.b32.xlu0 %v238, 120
    %v486 = vpop.permute.xlu0 %485
    %487 = vrot.lane.b32.xlu0 %v274, 120
    %v488 = vpop.permute.xlu0 %487
    %489 = vrot.lane.b32.xlu0 %v240, 120
    %v490 = vpop.permute.xlu0 %489
    %491 = vrot.lane.b32.xlu0 %v276, 120
    %v492 = vpop.permute.xlu0 %491
    %493 = vrot.lane.b32.xlu0 %v243, 120
    %v494 = vpop.permute.xlu0 %493
    %495 = vrot.lane.b32.xlu0 %v279, 120
    %v496 = vpop.permute.xlu0 %495
    %497 = vrot.lane.b32.xlu0 %v245, 120
    %v498 = vpop.permute.xlu0 %497
    %499 = vrot.lane.b32.xlu0 %v281, 120
    %v500 = vpop.permute.xlu0 %499
    %501 = vrot.lane.b32.xlu0 %v247, 120
    %v502 = vpop.permute.xlu0 %501
    %503 = vrot.lane.b32.xlu0 %v283, 120
    %v504 = vpop.permute.xlu0 %503
    %505 = vrot.lane.b32.xlu0 %v249, 120
    %v506 = vpop.permute.xlu0 %505
    %507 = vrot.lane.b32.xlu0 %v285, 120
    %v508 = vpop.permute.xlu0 %507
    %v509 = vsel %vm412, %v478, %v480
    %v510 = vsel %vm412, %v482, %v484
    %v511 = vsel %vm412, %v486, %v488
    %v512 = vsel %vm412, %v490, %v492
    %v513 = vsel %vm412, %v494, %v496
    %v514 = vsel %vm412, %v498, %v500
    %v515 = vsel %vm412, %v502, %v504
    %v516 = vsel %vm412, %v506, %v508
    %525 = vrot.lane.b32.xlu0 %v289, 124
    %v526 = vpop.permute.xlu0 %525
    %527 = vrot.lane.b32.xlu0 %v315, 124
    %v528 = vpop.permute.xlu0 %527
    %529 = vrot.lane.b32.xlu0 %v291, 124
    %v530 = vpop.permute.xlu0 %529
    %531 = vrot.lane.b32.xlu0 %v317, 124
    %v532 = vpop.permute.xlu0 %531
    %533 = vrot.lane.b32.xlu0 %v293, 124
    %v534 = vpop.permute.xlu0 %533
    %535 = vrot.lane.b32.xlu0 %v319, 124
    %v536 = vpop.permute.xlu0 %535
    %537 = vrot.lane.b32.xlu0 %v295, 124
    %v538 = vpop.permute.xlu0 %537
    %539 = vrot.lane.b32.xlu0 %v321, 124
    %v540 = vpop.permute.xlu0 %539
    %541 = vrot.lane.b32.xlu0 %v298, 124
    %v542 = vpop.permute.xlu0 %541
    %543 = vrot.lane.b32.xlu0 %v324, 124
    %v544 = vpop.permute.xlu0 %543
    %545 = vrot.lane.b32.xlu0 %v300, 124
    %v546 = vpop.permute.xlu0 %545
    %547 = vrot.lane.b32.xlu0 %v326, 124
    %v548 = vpop.permute.xlu0 %547
    %549 = vrot.lane.b32.xlu0 %v302, 124
    %v550 = vpop.permute.xlu0 %549
    %551 = vrot.lane.b32.xlu0 %v328, 124
    %v552 = vpop.permute.xlu0 %551
    %553 = vrot.lane.b32.xlu0 %v304, 124
    %v554 = vpop.permute.xlu0 %553
    %555 = vrot.lane.b32.xlu0 %v330, 124
    %v556 = vpop.permute.xlu0 %555
    %v557 = vsel %vm363, %v526, %v528
    %v558 = vsel %vm363, %v530, %v532
    %v559 = vsel %vm363, %v534, %v536
    %v560 = vsel %vm363, %v538, %v540
    %v561 = vsel %vm363, %v542, %v544
    %v562 = vsel %vm363, %v546, %v548
    %v563 = vsel %vm363, %v550, %v552
    %v564 = vsel %vm363, %v554, %v556
    %573 = vrot.lane.b32.xlu0 %v289, 120
    %v574 = vpop.permute.xlu0 %573
    %575 = vrot.lane.b32.xlu0 %v315, 120
    %v576 = vpop.permute.xlu0 %575
    %577 = vrot.lane.b32.xlu0 %v291, 120
    %v578 = vpop.permute.xlu0 %577
    %579 = vrot.lane.b32.xlu0 %v317, 120
    %v580 = vpop.permute.xlu0 %579
    %581 = vrot.lane.b32.xlu0 %v293, 120
    %v582 = vpop.permute.xlu0 %581
    %583 = vrot.lane.b32.xlu0 %v319, 120
    %v584 = vpop.permute.xlu0 %583
    %585 = vrot.lane.b32.xlu0 %v295, 120
    %v586 = vpop.permute.xlu0 %585
    %587 = vrot.lane.b32.xlu0 %v321, 120
    %v588 = vpop.permute.xlu0 %587
    %589 = vrot.lane.b32.xlu0 %v298, 120
    %v590 = vpop.permute.xlu0 %589
    %591 = vrot.lane.b32.xlu0 %v324, 120
    %v592 = vpop.permute.xlu0 %591
    %593 = vrot.lane.b32.xlu0 %v300, 120
    %v594 = vpop.permute.xlu0 %593
    %595 = vrot.lane.b32.xlu0 %v326, 120
    %v596 = vpop.permute.xlu0 %595
    %597 = vrot.lane.b32.xlu0 %v302, 120
    %v598 = vpop.permute.xlu0 %597
    %599 = vrot.lane.b32.xlu0 %v328, 120
    %v600 = vpop.permute.xlu0 %599
    %601 = vrot.lane.b32.xlu0 %v304, 120
    %v602 = vpop.permute.xlu0 %601
    %603 = vrot.lane.b32.xlu0 %v330, 120
    %v604 = vpop.permute.xlu0 %603
    %v605 = vsel %vm412, %v574, %v576
    %v606 = vsel %vm412, %v578, %v580
    %v607 = vsel %vm412, %v582, %v584
    %v608 = vsel %vm412, %v586, %v588
    %v609 = vsel %vm412, %v590, %v592
    %v610 = vsel %vm412, %v594, %v596
    %v611 = vsel %vm412, %v598, %v600
    %v612 = vsel %vm412, %v602, %v604
    %621 = vmatprep.subr.mxu0 0.0
    %622 = vmatpush1.msra.mxu0 %v58
    %623 = vmatprep.subr.mxu0 0.0
    %624 = vmatpush1.msra.mxu0 %v59
    %625 = vmatprep.subr.mxu0 0.0
    %626 = vmatpush1.msra.mxu0 %v60
    %627 = vmatprep.subr.mxu0 0.0
    %628 = vmatpush1.msra.mxu0 %v61
    %629 = vmatprep.subr.mxu0 0.0
    %630 = vmatpush1.msra.mxu0 %v62
    %631 = vmatprep.subr.mxu0 0.0
    %632 = vmatpush1.msra.mxu0 %v63
    %633 = vmatprep.subr.mxu0 0.0
    %634 = vmatpush1.msra.mxu0 %v64
    %635 = vmatprep.subr.mxu0 0.0
    %636 = vmatpush1.msra.mxu0 %v65
    %637 = vmatprep.subr.mxu0 0.0
    %638 = vmatpush1.msra.mxu0 %v66
    %639 = vmatprep.subr.mxu0 0.0
    %640 = vmatpush1.msra.mxu0 %v67
    %641 = vmatprep.subr.mxu0 0.0
    %642 = vmatpush1.msra.mxu0 %v68
    %643 = vmatprep.subr.mxu0 0.0
    %644 = vmatpush1.msra.mxu0 %v69
    %645 = vmatprep.subr.mxu0 0.0
    %646 = vmatpush1.msra.mxu0 %v70
    %647 = vmatprep.subr.mxu0 0.0
    %648 = vmatpush1.msra.mxu0 %v71
    %649 = vmatprep.subr.mxu0 0.0
    %650 = vmatpush1.msra.mxu0 %v72
    %651 = vmatprep.subr.mxu0 0.0
    %652 = vmatpush1.msra.mxu0 %v73
    %653 = vmatprep.subr.mxu0 0.0
    %654 = vmatpush1.msra.mxu0 %v74
    %655 = vmatprep.subr.mxu0 0.0
    %656 = vmatpush1.msra.mxu0 %v75
    %657 = vmatprep.subr.mxu0 0.0
    %658 = vmatpush1.msra.mxu0 %v76
    %659 = vmatprep.subr.mxu0 0.0
    %660 = vmatpush1.msra.mxu0 %v77
    %661 = vmatprep.subr.mxu0 0.0
    %662 = vmatpush1.msra.mxu0 %v78
    %663 = vmatprep.subr.mxu0 0.0
    %664 = vmatpush1.msra.mxu0 %v79
    %665 = vmatprep.subr.mxu0 0.0
    %666 = vmatpush1.msra.mxu0 %v80
    %667 = vmatprep.subr.mxu0 0.0
    %668 = vmatpush1.msra.mxu0 %v81
    %669 = vmatprep.subr.mxu0 0.0
    %670 = vmatpush1.msra.mxu0 %v82
    %671 = vmatprep.subr.mxu0 0.0
    %672 = vmatpush1.msra.mxu0 %v83
    %673 = vmatprep.subr.mxu0 0.0
    %674 = vmatpush1.msra.mxu0 %v84
    %675 = vmatprep.subr.mxu0 0.0
    %676 = vmatpush1.msra.mxu0 %v85
    %677 = vmatprep.subr.mxu0 0.0
    %678 = vmatpush1.msra.mxu0 %v86
    %679 = vmatprep.subr.mxu0 0.0
    %680 = vmatpush1.msra.mxu0 %v87
    %681 = vmatprep.subr.mxu0 0.0
    %682 = vmatpush1.msra.mxu0 %v88
    %683 = vmatprep.subr.mxu0 0.0
    %684 = vmatpush1.msra.mxu0 %v89
    %685 = vmatprep.mubr.f32.mxu0 %v364
    %686 = vmatmul.mubr.f32.gmra.mrb[0].mxu0 %v38
    %v687 = vpop.f32.mrb[0].mxu0
    %v688 = vadd.f32 0.0, %v687
    %v689 = vpop.f32.mrb[0].mxu0
    %690 = vmatprep.mubr.f32.mxu0 %v365
    %691 = vmatmul.mubr.f32.gmra.mrb[0].mxu0 %v40
    %v692 = vpop.f32.mrb[0].mxu0
    %v693 = vadd.f32 0.0, %v692
    %v694 = vpop.f32.mrb[0].mxu0
    %695 = vmatprep.mubr.f32.mxu0 %v366
    %696 = vmatmul.mubr.f32.gmra.mrb[0].mxu0 %v42
    %v697 = vpop.f32.mrb[0].mxu0
    %v698 = vadd.f32 0.0, %v697
    %v699 = vpop.f32.mrb[0].mxu0
    %700 = vmatprep.mubr.f32.mxu0 %v367
    %701 = vmatmul.mubr.f32.gmra.mrb[0].mxu0 %v44
    %v702 = vpop.f32.mrb[0].mxu0
    %v703 = vadd.f32 0.0, %v702
    %v704 = vpop.f32.mrb[0].mxu0
    %705 = vmatprep.mubr.f32.mxu0 %v368
    %706 = vmatmul.mubr.f32.gmra.mrb[0].mxu0 %v48
    %v707 = vpop.f32.mrb[0].mxu0
    %v708 = vadd.f32 0.0, %v707
    %v709 = vpop.f32.mrb[0].mxu0
    %710 = vmatprep.mubr.f32.mxu0 %v369
    %711 = vmatmul.mubr.f32.gmra.mrb[0].mxu0 %v50
    %v712 = vpop.f32.mrb[0].mxu0
    %v713 = vadd.f32 0.0, %v712
    %v714 = vpop.f32.mrb[0].mxu0
    %715 = vmatprep.mubr.f32.mxu0 %v370
    %716 = vmatmul.mubr.f32.gmra.mrb[0].mxu0 %v52
    %v717 = vpop.f32.mrb[0].mxu0
    %v718 = vadd.f32 0.0, %v717
    %v719 = vpop.f32.mrb[0].mxu0
    %720 = vmatprep.mubr.f32.mxu0 %v371
    %721 = vmatmul.mubr.f32.gmra.mrb[0].mxu0 %v54
    %v722 = vpop.f32.mrb[0].mxu0
    %v723 = vadd.f32 0.0, %v722
    %v724 = vpop.f32.mrb[0].mxu0
    %725 = vdwg.mxu0
    %726 = vmatprep.subr.mxu0 0.0
    %727 = vmatpush1.msra.mxu0 %v90
    %728 = vmatprep.subr.mxu0 0.0
    %729 = vmatpush1.msra.mxu0 %v91
    %730 = vmatprep.subr.mxu0 0.0
    %731 = vmatpush1.msra.mxu0 %v92
    %732 = vmatprep.subr.mxu0 0.0
    %733 = vmatpush1.msra.mxu0 %v93
    %734 = vmatprep.subr.mxu0 0.0
    %735 = vmatpush1.msra.mxu0 %v94
    %736 = vmatprep.subr.mxu0 0.0
    %737 = vmatpush1.msra.mxu0 %v95
    %738 = vmatprep.subr.mxu0 0.0
    %739 = vmatpush1.msra.mxu0 %v96
    %740 = vmatprep.subr.mxu0 0.0
    %741 = vmatpush1.msra.mxu0 %v97
    %742 = vmatprep.subr.mxu0 0.0
    %743 = vmatpush1.msra.mxu0 %v98
    %744 = vmatprep.subr.mxu0 0.0
    %745 = vmatpush1.msra.mxu0 %v99
    %746 = vmatprep.subr.mxu0 0.0
    %747 = vmatpush1.msra.mxu0 %v100
    %748 = vmatprep.subr.mxu0 0.0
    %749 = vmatpush1.msra.mxu0 %v101
    %750 = vmatprep.subr.mxu0 0.0
    %751 = vmatpush1.msra.mxu0 %v102
    %752 = vmatprep.subr.mxu0 0.0
    %753 = vmatpush1.msra.mxu0 %v103
    %754 = vmatprep.subr.mxu0 0.0
    %755 = vmatpush1.msra.mxu0 %v104
    %756 = vmatprep.subr.mxu0 0.0
    %757 = vmatpush1.msra.mxu0 %v105
    %758 = vmatprep.subr.mxu0 0.0
    %759 = vmatpush1.msra.mxu0 %v106
    %760 = vmatprep.subr.mxu0 0.0
    %761 = vmatpush1.msra.mxu0 %v107
    %762 = vmatprep.subr.mxu0 0.0
    %763 = vmatpush1.msra.mxu0 %v108
    %764 = vmatprep.subr.mxu0 0.0
    %765 = vmatpush1.msra.mxu0 %v109
    %766 = vmatprep.subr.mxu0 0.0
    %767 = vmatpush1.msra.mxu0 %v110
    %768 = vmatprep.subr.mxu0 0.0
    %769 = vmatpush1.msra.mxu0 %v111
    %770 = vmatprep.subr.mxu0 0.0
    %771 = vmatpush1.msra.mxu0 %v112
    %772 = vmatprep.subr.mxu0 0.0
    %773 = vmatpush1.msra.mxu0 %v113
    %774 = vmatprep.subr.mxu0 0.0
    %775 = vmatpush1.msra.mxu0 %v114
    %776 = vmatprep.subr.mxu0 0.0
    %777 = vmatpush1.msra.mxu0 %v115
    %778 = vmatprep.subr.mxu0 0.0
    %779 = vmatpush1.msra.mxu0 %v116
    %780 = vmatprep.subr.mxu0 0.0
    %781 = vmatpush1.msra.mxu0 %v117
    %782 = vmatprep.subr.mxu0 0.0
    %783 = vmatpush1.msra.mxu0 %v118
    %784 = vmatprep.subr.mxu0 0.0
    %785 = vmatpush1.msra.mxu0 %v119
    %786 = vmatprep.subr.mxu0 0.0
    %787 = vmatpush1.msra.mxu0 %v120
    %788 = vmatprep.subr.mxu0 0.0
    %789 = vmatpush1.msra.mxu0 %v121
    %790 = vmatprep.mubr.f32.mxu0 %v234
    %791 = vmatmul.mubr.f32.gmra.mrb[0].mxu0 %v413
    %v792 = vpop.f32.mrb[0].mxu0
    %v793 = vadd.f32 %v688, %v792
    %v794 = vpop.f32.mrb[0].mxu0
    %795 = vmatprep.mubr.f32.mxu0 %v236
    %796 = vmatmul.mubr.f32.gmra.mrb[0].mxu0 %v414
    %v797 = vpop.f32.mrb[0].mxu0
    %v798 = vadd.f32 %v693, %v797
    %v799 = vpop.f32.mrb[0].mxu0
    %800 = vmatprep.mubr.f32.mxu0 %v238
    %801 = vmatmul.mubr.f32.gmra.mrb[0].mxu0 %v415
    %v802 = vpop.f32.mrb[0].mxu0
    %v803 = vadd.f32 %v698, %v802
    %v804 = vpop.f32.mrb[0].mxu0
    %805 = vmatprep.mubr.f32.mxu0 %v240
    %806 = vmatmul.mubr.f32.gmra.mrb[0].mxu0 %v416
    %v807 = vpop.f32.mrb[0].mxu0
    %v808 = vadd.f32 %v703, %v807
    %v809 = vpop.f32.mrb[0].mxu0
    %810 = vmatprep.mubr.f32.mxu0 %v243
    %811 = vmatmul.mubr.f32.gmra.mrb[0].mxu0 %v417
    %v812 = vpop.f32.mrb[0].mxu0
    %v813 = vadd.f32 %v708, %v812
    %v814 = vpop.f32.mrb[0].mxu0
    %815 = vmatprep.mubr.f32.mxu0 %v245
    %816 = vmatmul.mubr.f32.gmra.mrb[0].mxu0 %v418
    %v817 = vpop.f32.mrb[0].mxu0
    %v818 = vadd.f32 %v713, %v817
    %v819 = vpop.f32.mrb[0].mxu0
    %820 = vmatprep.mubr.f32.mxu0 %v247
    %821 = vmatmul.mubr.f32.gmra.mrb[0].mxu0 %v419
    %v822 = vpop.f32.mrb[0].mxu0
    %v823 = vadd.f32 %v718, %v822
    %v824 = vpop.f32.mrb[0].mxu0
    %825 = vmatprep.mubr.f32.mxu0 %v249
    %826 = vmatmul.mubr.f32.gmra.mrb[0].mxu0 %v420
    %v827 = vpop.f32.mrb[0].mxu0
    %v828 = vadd.f32 %v723, %v827
    %v829 = vpop.f32.mrb[0].mxu0
    %830 = vdwg.mxu0
    %831 = vmatprep.subr.mxu0 0.0
    %832 = vmatpush1.msra.mxu0 %v122
    %833 = vmatprep.subr.mxu0 0.0
    %834 = vmatpush1.msra.mxu0 %v123
    %835 = vmatprep.subr.mxu0 0.0
    %836 = vmatpush1.msra.mxu0 %v124
    %837 = vmatprep.subr.mxu0 0.0
    %838 = vmatpush1.msra.mxu0 %v125
    %839 = vmatprep.subr.mxu0 0.0
    %840 = vmatpush1.msra.mxu0 %v126
    %841 = vmatprep.subr.mxu0 0.0
    %842 = vmatpush1.msra.mxu0 %v127
    %843 = vmatprep.subr.mxu0 0.0
    %844 = vmatpush1.msra.mxu0 %v128
    %845 = vmatprep.subr.mxu0 0.0
    %846 = vmatpush1.msra.mxu0 %v129
    %847 = vmatprep.subr.mxu0 0.0
    %848 = vmatpush1.msra.mxu0 %v130
    %849 = vmatprep.subr.mxu0 0.0
    %850 = vmatpush1.msra.mxu0 %v131
    %851 = vmatprep.subr.mxu0 0.0
    %852 = vmatpush1.msra.mxu0 %v132
    %853 = vmatprep.subr.mxu0 0.0
    %854 = vmatpush1.msra.mxu0 %v133
    %855 = vmatprep.subr.mxu0 0.0
    %856 = vmatpush1.msra.mxu0 %v134
    %857 = vmatprep.subr.mxu0 0.0
    %858 = vmatpush1.msra.mxu0 %v135
    %859 = vmatprep.subr.mxu0 0.0
    %860 = vmatpush1.msra.mxu0 %v136
    %861 = vmatprep.subr.mxu0 0.0
    %862 = vmatpush1.msra.mxu0 %v137
    %863 = vmatprep.subr.mxu0 0.0
    %864 = vmatpush1.msra.mxu0 %v138
    %865 = vmatprep.subr.mxu0 0.0
    %866 = vmatpush1.msra.mxu0 %v139
    %867 = vmatprep.subr.mxu0 0.0
    %868 = vmatpush1.msra.mxu0 %v140
    %869 = vmatprep.subr.mxu0 0.0
    %870 = vmatpush1.msra.mxu0 %v141
    %871 = vmatprep.subr.mxu0 0.0
    %872 = vmatpush1.msra.mxu0 %v142
    %873 = vmatprep.subr.mxu0 0.0
    %874 = vmatpush1.msra.mxu0 %v143
    %875 = vmatprep.subr.mxu0 0.0
    %876 = vmatpush1.msra.mxu0 %v144
    %877 = vmatprep.subr.mxu0 0.0
    %878 = vmatpush1.msra.mxu0 %v145
    %879 = vmatprep.subr.mxu0 0.0
    %880 = vmatpush1.msra.mxu0 %v146
    %881 = vmatprep.subr.mxu0 0.0
    %882 = vmatpush1.msra.mxu0 %v147
    %883 = vmatprep.subr.mxu0 0.0
    %884 = vmatpush1.msra.mxu0 %v148
    %885 = vmatprep.subr.mxu0 0.0
    %886 = vmatpush1.msra.mxu0 %v149
    %887 = vmatprep.subr.mxu0 0.0
    %888 = vmatpush1.msra.mxu0 %v150
    %889 = vmatprep.subr.mxu0 0.0
    %890 = vmatpush1.msra.mxu0 %v151
    %891 = vmatprep.subr.mxu0 0.0
    %892 = vmatpush1.msra.mxu0 %v152
    %893 = vmatprep.subr.mxu0 0.0
    %894 = vmatpush1.msra.mxu0 %v153
    %895 = vmatprep.mubr.f32.mxu0 %v509
    %896 = vmatmul.mubr.f32.gmra.mrb[0].mxu0 %v461
    %v897 = vpop.f32.mrb[0].mxu0
    %v898 = vadd.f32 %v793, %v897
    %v899 = vpop.f32.mrb[0].mxu0
    %900 = vmatprep.mubr.f32.mxu0 %v510
    %901 = vmatmul.mubr.f32.gmra.mrb[0].mxu0 %v462
    %v902 = vpop.f32.mrb[0].mxu0
    %v903 = vadd.f32 %v798, %v902
    %v904 = vpop.f32.mrb[0].mxu0
    %905 = vmatprep.mubr.f32.mxu0 %v511
    %906 = vmatmul.mubr.f32.gmra.mrb[0].mxu0 %v463
    %v907 = vpop.f32.mrb[0].mxu0
    %v908 = vadd.f32 %v803, %v907
    %v909 = vpop.f32.mrb[0].mxu0
    %910 = vmatprep.mubr.f32.mxu0 %v512
    %911 = vmatmul.mubr.f32.gmra.mrb[0].mxu0 %v464
    %v912 = vpop.f32.mrb[0].mxu0
    %v913 = vadd.f32 %v808, %v912
    %v914 = vpop.f32.mrb[0].mxu0
    %915 = vmatprep.mubr.f32.mxu0 %v513
    %916 = vmatmul.mubr.f32.gmra.mrb[0].mxu0 %v465
    %v917 = vpop.f32.mrb[0].mxu0
    %v918 = vadd.f32 %v813, %v917
    %v919 = vpop.f32.mrb[0].mxu0
    %920 = vmatprep.mubr.f32.mxu0 %v514
    %921 = vmatmul.mubr.f32.gmra.mrb[0].mxu0 %v466
    %v922 = vpop.f32.mrb[0].mxu0
    %v923 = vadd.f32 %v818, %v922
    %v924 = vpop.f32.mrb[0].mxu0
    %925 = vmatprep.mubr.f32.mxu0 %v515
    %926 = vmatmul.mubr.f32.gmra.mrb[0].mxu0 %v467
    %v927 = vpop.f32.mrb[0].mxu0
    %v928 = vadd.f32 %v823, %v927
    %v929 = vpop.f32.mrb[0].mxu0
    %930 = vmatprep.mubr.f32.mxu0 %v516
    %931 = vmatmul.mubr.f32.gmra.mrb[0].mxu0 %v468
    %v932 = vpop.f32.mrb[0].mxu0
    %v933 = vadd.f32 %v828, %v932
    %v934 = vpop.f32.mrb[0].mxu0
    %935 = vdwg.mxu0
    %936 = vmatprep.subr.mxu0 0.0
    %937 = vmatpush1.msra.mxu0 %v154
    %938 = vmatprep.subr.mxu0 0.0
    %939 = vmatpush1.msra.mxu0 %v155
    %940 = vmatprep.subr.mxu0 0.0
    %941 = vmatpush1.msra.mxu0 %v156
    %942 = vmatprep.subr.mxu0 0.0
    %943 = vmatpush1.msra.mxu0 %v157
    %944 = vmatprep.subr.mxu0 0.0
    %945 = vmatpush1.msra.mxu0 %v158
    %946 = vmatprep.subr.mxu0 0.0
    %947 = vmatpush1.msra.mxu0 %v159
    %948 = vmatprep.subr.mxu0 0.0
    %949 = vmatpush1.msra.mxu0 %v160
    %950 = vmatprep.subr.mxu0 0.0
    %951 = vmatpush1.msra.mxu0 %v161
    %952 = vmatprep.subr.mxu0 0.0
    %953 = vmatpush1.msra.mxu0 %v162
    %954 = vmatprep.subr.mxu0 0.0
    %955 = vmatpush1.msra.mxu0 %v163
    %956 = vmatprep.subr.mxu0 0.0
    %957 = vmatpush1.msra.mxu0 %v164
    %958 = vmatprep.subr.mxu0 0.0
    %959 = vmatpush1.msra.mxu0 %v165
    %960 = vmatprep.subr.mxu0 0.0
    %961 = vmatpush1.msra.mxu0 %v166
    %962 = vmatprep.subr.mxu0 0.0
    %963 = vmatpush1.msra.mxu0 %v167
    %964 = vmatprep.subr.mxu0 0.0
    %965 = vmatpush1.msra.mxu0 %v168
    %966 = vmatprep.subr.mxu0 0.0
    %967 = vmatpush1.msra.mxu0 %v169
    %968 = vmatprep.subr.mxu0 0.0
    %969 = vmatpush1.msra.mxu0 %v170
    %970 = vmatprep.subr.mxu0 0.0
    %971 = vmatpush1.msra.mxu0 %v171
    %972 = vmatprep.subr.mxu0 0.0
    %973 = vmatpush1.msra.mxu0 %v172
    %974 = vmatprep.subr.mxu0 0.0
    %975 = vmatpush1.msra.mxu0 %v173
    %976 = vmatprep.subr.mxu0 0.0
    %977 = vmatpush1.msra.mxu0 %v174
    %978 = vmatprep.subr.mxu0 0.0
    %979 = vmatpush1.msra.mxu0 %v175
    %980 = vmatprep.subr.mxu0 0.0
    %981 = vmatpush1.msra.mxu0 %v176
    %982 = vmatprep.subr.mxu0 0.0
    %983 = vmatpush1.msra.mxu0 %v177
    %984 = vmatprep.subr.mxu0 0.0
    %985 = vmatpush1.msra.mxu0 %v178
    %986 = vmatprep.subr.mxu0 0.0
    %987 = vmatpush1.msra.mxu0 %v179
    %988 = vmatprep.subr.mxu0 0.0
    %989 = vmatpush1.msra.mxu0 %v180
    %990 = vmatprep.subr.mxu0 0.0
    %991 = vmatpush1.msra.mxu0 %v181
    %992 = vmatprep.subr.mxu0 0.0
    %993 = vmatpush1.msra.mxu0 %v182
    %994 = vmatprep.subr.mxu0 0.0
    %995 = vmatpush1.msra.mxu0 %v183
    %996 = vmatprep.subr.mxu0 0.0
    %997 = vmatpush1.msra.mxu0 %v184
    %998 = vmatprep.subr.mxu0 0.0
    %999 = vmatpush1.msra.mxu0 %v185
    %1000 = vmatprep.mubr.f32.mxu0 %v557
    %1001 = vmatmul.mubr.f32.gmra.mrb[0].mxu0 %v289
    %v1002 = vpop.f32.mrb[0].mxu0
    %v1003 = vadd.f32 %v898, %v1002
    %v1004 = vpop.f32.mrb[0].mxu0
    %1005 = vmatprep.mubr.f32.mxu0 %v558
    %1006 = vmatmul.mubr.f32.gmra.mrb[0].mxu0 %v291
    %v1007 = vpop.f32.mrb[0].mxu0
    %v1008 = vadd.f32 %v903, %v1007
    %v1009 = vpop.f32.mrb[0].mxu0
    %1010 = vmatprep.mubr.f32.mxu0 %v559
    %1011 = vmatmul.mubr.f32.gmra.mrb[0].mxu0 %v293
    %v1012 = vpop.f32.mrb[0].mxu0
    %v1013 = vadd.f32 %v908, %v1012
    %v1014 = vpop.f32.mrb[0].mxu0
    %1015 = vmatprep.mubr.f32.mxu0 %v560
    %1016 = vmatmul.mubr.f32.gmra.mrb[0].mxu0 %v295
    %v1017 = vpop.f32.mrb[0].mxu0
    %v1018 = vadd.f32 %v913, %v1017
    %v1019 = vpop.f32.mrb[0].mxu0
    %1020 = vmatprep.mubr.f32.mxu0 %v561
    %1021 = vmatmul.mubr.f32.gmra.mrb[0].mxu0 %v298
    %v1022 = vpop.f32.mrb[0].mxu0
    %v1023 = vadd.f32 %v918, %v1022
    %v1024 = vpop.f32.mrb[0].mxu0
    %1025 = vmatprep.mubr.f32.mxu0 %v562
    %1026 = vmatmul.mubr.f32.gmra.mrb[0].mxu0 %v300
    %v1027 = vpop.f32.mrb[0].mxu0
    %v1028 = vadd.f32 %v923, %v1027
    %v1029 = vpop.f32.mrb[0].mxu0
    %1030 = vmatprep.mubr.f32.mxu0 %v563
    %1031 = vmatmul.mubr.f32.gmra.mrb[0].mxu0 %v302
    %v1032 = vpop.f32.mrb[0].mxu0
    %v1033 = vadd.f32 %v928, %v1032
    %v1034 = vpop.f32.mrb[0].mxu0
    %1035 = vmatprep.mubr.f32.mxu0 %v564
    %1036 = vmatmul.mubr.f32.gmra.mrb[0].mxu0 %v304
    %v1037 = vpop.f32.mrb[0].mxu0
    %v1038 = vadd.f32 %v933, %v1037
    %v1039 = vpop.f32.mrb[0].mxu0
    %1040 = vdwg.mxu0
    %1041 = vmatprep.subr.mxu0 0.0
    %1042 = vmatpush1.msra.mxu0 %v186
    %1043 = vmatprep.subr.mxu0 0.0
    %1044 = vmatpush1.msra.mxu0 %v187
    %1045 = vmatprep.subr.mxu0 0.0
    %1046 = vmatpush1.msra.mxu0 %v188
    %1047 = vmatprep.subr.mxu0 0.0
    %1048 = vmatpush1.msra.mxu0 %v189
    %1049 = vmatprep.subr.mxu0 0.0
    %1050 = vmatpush1.msra.mxu0 %v190
    %1051 = vmatprep.subr.mxu0 0.0
    %1052 = vmatpush1.msra.mxu0 %v191
    %1053 = vmatprep.subr.mxu0 0.0
    %1054 = vmatpush1.msra.mxu0 %v192
    %1055 = vmatprep.subr.mxu0 0.0
    %1056 = vmatpush1.msra.mxu0 %v193
    %1057 = vmatprep.subr.mxu0 0.0
    %1058 = vmatpush1.msra.mxu0 %v194
    %1059 = vmatprep.subr.mxu0 0.0
    %1060 = vmatpush1.msra.mxu0 %v195
    %1061 = vmatprep.subr.mxu0 0.0
    %1062 = vmatpush1.msra.mxu0 %v196
    %1063 = vmatprep.subr.mxu0 0.0
    %1064 = vmatpush1.msra.mxu0 %v197
    %1065 = vmatprep.subr.mxu0 0.0
    %1066 = vmatpush1.msra.mxu0 %v198
    %1067 = vmatprep.subr.mxu0 0.0
    %1068 = vmatpush1.msra.mxu0 %v199
    %1069 = vmatprep.subr.mxu0 0.0
    %1070 = vmatpush1.msra.mxu0 %v200
    %1071 = vmatprep.subr.mxu0 0.0
    %1072 = vmatpush1.msra.mxu0 %v201
    %1073 = vmatprep.subr.mxu0 0.0
    %1074 = vmatpush1.msra.mxu0 0.0
    %1075 = vmatprep.subr.mxu0 0.0
    %1076 = vmatpush1.msra.mxu0 0.0
    %1077 = vmatprep.subr.mxu0 0.0
    %1078 = vmatpush1.msra.mxu0 0.0
    %1079 = vmatprep.subr.mxu0 0.0
    %1080 = vmatpush1.msra.mxu0 0.0
    %1081 = vmatprep.subr.mxu0 0.0
    %1082 = vmatpush1.msra.mxu0 0.0
    %1083 = vmatprep.subr.mxu0 0.0
    %1084 = vmatpush1.msra.mxu0 0.0
    %1085 = vmatprep.subr.mxu0 0.0
    %1086 = vmatpush1.msra.mxu0 0.0
    %1087 = vmatprep.subr.mxu0 0.0
    %1088 = vmatpush1.msra.mxu0 0.0
    %1089 = vmatprep.subr.mxu0 0.0
    %1090 = vmatpush1.msra.mxu0 0.0
    %1091 = vmatprep.subr.mxu0 0.0
    %1092 = vmatpush1.msra.mxu0 0.0
    %1093 = vmatprep.subr.mxu0 0.0
    %1094 = vmatpush1.msra.mxu0 0.0
    %1095 = vmatprep.subr.mxu0 0.0
    %1096 = vmatpush1.msra.mxu0 0.0
    %1097 = vmatprep.subr.mxu0 0.0
    %1098 = vmatpush1.msra.mxu0 0.0
    %1099 = vmatprep.subr.mxu0 0.0
    %1100 = vmatpush1.msra.mxu0 0.0
    %1101 = vmatprep.subr.mxu0 0.0
    %1102 = vmatpush1.msra.mxu0 0.0
    %1103 = vmatprep.subr.mxu0 0.0
    %1104 = vmatpush1.msra.mxu0 0.0
    %1105 = vmatprep.mubr.f32.mxu0 0.0
    %1106 = vmatmul.mubr.f32.gmra.mrb[0].mxu0 %v605
    %v1107 = vpop.f32.mrb[0].mxu0
    %v1108 = vadd.f32 %v1003, %v1107
    %v1109 = vpop.f32.mrb[0].mxu0
    %1110 = vmatprep.mubr.f32.mxu0 0.0
    %1111 = vmatmul.mubr.f32.gmra.mrb[0].mxu0 %v606
    %v1112 = vpop.f32.mrb[0].mxu0
    %v1113 = vadd.f32 %v1008, %v1112
    %v1114 = vpop.f32.mrb[0].mxu0
    %1115 = vmatprep.mubr.f32.mxu0 0.0
    %1116 = vmatmul.mubr.f32.gmra.mrb[0].mxu0 %v607
    %v1117 = vpop.f32.mrb[0].mxu0
    %v1118 = vadd.f32 %v1013, %v1117
    %v1119 = vpop.f32.mrb[0].mxu0
    %1120 = vmatprep.mubr.f32.mxu0 0.0
    %1121 = vmatmul.mubr.f32.gmra.mrb[0].mxu0 %v608
    %v1122 = vpop.f32.mrb[0].mxu0
    %v1123 = vadd.f32 %v1018, %v1122
    %v1124 = vpop.f32.mrb[0].mxu0
    %1125 = vmatprep.mubr.f32.mxu0 0.0
    %1126 = vmatmul.mubr.f32.gmra.mrb[0].mxu0 %v609
    %v1127 = vpop.f32.mrb[0].mxu0
    %v1128 = vadd.f32 %v1023, %v1127
    %v1129 = vpop.f32.mrb[0].mxu0
    %1130 = vmatprep.mubr.f32.mxu0 0.0
    %1131 = vmatmul.mubr.f32.gmra.mrb[0].mxu0 %v610
    %v1132 = vpop.f32.mrb[0].mxu0
    %v1133 = vadd.f32 %v1028, %v1132
    %v1134 = vpop.f32.mrb[0].mxu0
    %1135 = vmatprep.mubr.f32.mxu0 0.0
    %1136 = vmatmul.mubr.f32.gmra.mrb[0].mxu0 %v611
    %v1137 = vpop.f32.mrb[0].mxu0
    %v1138 = vadd.f32 %v1033, %v1137
    %v1139 = vpop.f32.mrb[0].mxu0
    %1140 = vmatprep.mubr.f32.mxu0 0.0
    %1141 = vmatmul.mubr.f32.gmra.mrb[0].mxu0 %v612
    %v1142 = vpop.f32.mrb[0].mxu0
    %v1143 = vadd.f32 %v1038, %v1142
    %v1144 = vpop.f32.mrb[0].mxu0
    %1145 = vdwg.mxu0
    %v1146 = vadd.f32 %v1108, %v1113
    %v1147 = vadd.f32 %v1146, %v1118
    %v1148 = vadd.f32 %v1147, %v1123
    %v1149 = vrot.slane %v1148, 4
    %v1150 = vadd.f32 %v1148, %v1149
    %v1151 = vrot.slane %v1150, 2
    %v1152 = vadd.f32 %v1150, %v1151
    %v1153 = vrot.slane %v1152, 1
    %v1154 = vadd.f32 %v1152, %v1153
    %v1155 = vadd.f32 %v1128, %v1133
    %v1156 = vadd.f32 %v1155, %v1138
    %v1157 = vadd.f32 %v1156, %v1143
    %v1158 = vrot.slane %v1157, 4
    %v1159 = vadd.f32 %v1157, %v1158
    %v1160 = vrot.slane %v1159, 2
    %v1161 = vadd.f32 %v1159, %v1160
    %v1162 = vrot.slane %v1161, 1
    %v1163 = vadd.f32 %v1161, %v1162
    %vm1166 = vcmask 1041409
    %v1167 = vsel %vm1166, %v1163, %v1154
    %1169 = vmatprep.subr.mxu0 0.0
    %1170 = vmatpush1.msra.mxu0 %v202
    %1171 = vmatprep.subr.mxu0 0.0
    %1172 = vmatpush1.msra.mxu0 %v203
    %1173 = vmatprep.subr.mxu0 0.0
    %1174 = vmatpush1.msra.mxu0 %v204
    %1175 = vmatprep.subr.mxu0 0.0
    %1176 = vmatpush1.msra.mxu0 %v205
    %1177 = vmatprep.subr.mxu0 0.0
    %1178 = vmatpush1.msra.mxu0 %v206
    %1179 = vmatprep.subr.mxu0 0.0
    %1180 = vmatpush1.msra.mxu0 %v207
    %1181 = vmatprep.subr.mxu0 0.0
    %1182 = vmatpush1.msra.mxu0 %v208
    %1183 = vmatprep.subr.mxu0 0.0
    %1184 = vmatpush1.msra.mxu0 %v209
    %1185 = vmatprep.subr.mxu0 0.0
    %1186 = vmatpush1.msra.mxu0 %v210
    %1187 = vmatprep.subr.mxu0 0.0
    %1188 = vmatpush1.msra.mxu0 %v211
    %1189 = vmatprep.subr.mxu0 0.0
    %1190 = vmatpush1.msra.mxu0 %v212
    %1191 = vmatprep.subr.mxu0 0.0
    %1192 = vmatpush1.msra.mxu0 %v213
    %1193 = vmatprep.subr.mxu0 0.0
    %1194 = vmatpush1.msra.mxu0 %v214
    %1195 = vmatprep.subr.mxu0 0.0
    %1196 = vmatpush1.msra.mxu0 %v215
    %1197 = vmatprep.subr.mxu0 0.0
    %1198 = vmatpush1.msra.mxu0 %v216
    %1199 = vmatprep.subr.mxu0 0.0
    %1200 = vmatpush1.msra.mxu0 %v217
    %1201 = vmatprep.subr.mxu0 0.0
    %1202 = vmatpush1.msra.mxu0 0.0
    %1203 = vmatprep.subr.mxu0 0.0
    %1204 = vmatpush1.msra.mxu0 0.0
    %1205 = vmatprep.subr.mxu0 0.0
    %1206 = vmatpush1.msra.mxu0 0.0
    %1207 = vmatprep.subr.mxu0 0.0
    %1208 = vmatpush1.msra.mxu0 0.0
    %1209 = vmatprep.subr.mxu0 0.0
    %1210 = vmatpush1.msra.mxu0 0.0
    %1211 = vmatprep.subr.mxu0 0.0
    %1212 = vmatpush1.msra.mxu0 0.0
    %1213 = vmatprep.subr.mxu0 0.0
    %1214 = vmatpush1.msra.mxu0 0.0
    %1215 = vmatprep.subr.mxu0 0.0
    %1216 = vmatpush1.msra.mxu0 0.0
    %1217 = vmatprep.subr.mxu0 0.0
    %1218 = vmatpush1.msra.mxu0 0.0
    %1219 = vmatprep.subr.mxu0 0.0
    %1220 = vmatpush1.msra.mxu0 0.0
    %1221 = vmatprep.subr.mxu0 0.0
    %1222 = vmatpush1.msra.mxu0 0.0
    %1223 = vmatprep.subr.mxu0 0.0
    %1224 = vmatpush1.msra.mxu0 0.0
    %1225 = vmatprep.subr.mxu0 0.0
    %1226 = vmatpush1.msra.mxu0 0.0
    %1227 = vmatprep.subr.mxu0 0.0
    %1228 = vmatpush1.msra.mxu0 0.0
    %1229 = vmatprep.subr.mxu0 0.0
    %1230 = vmatpush1.msra.mxu0 0.0
    %1231 = vmatprep.subr.mxu0 0.0
    %1232 = vmatpush1.msra.mxu0 0.0
    %1233 = vmatprep.mubr.f32.mxu0 0.0
    %1234 = vmatmul.mubr.f32.gmra.mrb[0].mxu0 %v1167
    %v1235 = vpop.f32.mrb[0].mxu0
    %v1236 = vadd.f32 0.0, %v1235
    %v1237 = vpop.f32.mrb[0].mxu0
    %1238 = vdwg.mxu0
    %v1239 = vmul.f32 %v1236, 0.0009765625
    %vm1240 = vcmask 31744
    %v1242 = vsel %vm1240, %v1239, 0
    %vm1244 = vcmask 1043456
    %v1246 = vsel %vm1244, %v218, 0
    %1248 = vmatprep.subr.mxu0 0.0
    %1249 = vmatpush1.msra.mxu0 %v1246
    %1250 = vmatprep.subr.mxu0 0.0
    %1251 = vmatpush1.msra.mxu0 0.0
    %1252 = vmatprep.subr.mxu0 0.0
    %1253 = vmatpush1.msra.mxu0 0.0
    %1254 = vmatprep.subr.mxu0 0.0
    %1255 = vmatpush1.msra.mxu0 0.0
    %1256 = vmatprep.subr.mxu0 0.0
    %1257 = vmatpush1.msra.mxu0 0.0
    %1258 = vmatprep.subr.mxu0 0.0
    %1259 = vmatpush1.msra.mxu0 0.0
    %1260 = vmatprep.subr.mxu0 0.0
    %1261 = vmatpush1.msra.mxu0 0.0
    %1262 = vmatprep.subr.mxu0 0.0
    %1263 = vmatpush1.msra.mxu0 0.0
    %1264 = vmatprep.subr.mxu0 0.0
    %1265 = vmatpush1.msra.mxu0 0.0
    %1266 = vmatprep.subr.mxu0 0.0
    %1267 = vmatpush1.msra.mxu0 0.0
    %1268 = vmatprep.subr.mxu0 0.0
    %1269 = vmatpush1.msra.mxu0 0.0
    %1270 = vmatprep.subr.mxu0 0.0
    %1271 = vmatpush1.msra.mxu0 0.0
    %1272 = vmatprep.subr.mxu0 0.0
    %1273 = vmatpush1.msra.mxu0 0.0
    %1274 = vmatprep.subr.mxu0 0.0
    %1275 = vmatpush1.msra.mxu0 0.0
    %1276 = vmatprep.subr.mxu0 0.0
    %1277 = vmatpush1.msra.mxu0 0.0
    %1278 = vmatprep.subr.mxu0 0.0
    %1279 = vmatpush1.msra.mxu0 0.0
    %1280 = vmatprep.subr.mxu0 0.0
    %1281 = vmatpush1.msra.mxu0 0.0
    %1282 = vmatprep.subr.mxu0 0.0
    %1283 = vmatpush1.msra.mxu0 0.0
    %1284 = vmatprep.subr.mxu0 0.0
    %1285 = vmatpush1.msra.mxu0 0.0
    %1286 = vmatprep.subr.mxu0 0.0
    %1287 = vmatpush1.msra.mxu0 0.0
    %1288 = vmatprep.subr.mxu0 0.0
    %1289 = vmatpush1.msra.mxu0 0.0
    %1290 = vmatprep.subr.mxu0 0.0
    %1291 = vmatpush1.msra.mxu0 0.0
    %1292 = vmatprep.subr.mxu0 0.0
    %1293 = vmatpush1.msra.mxu0 0.0
    %1294 = vmatprep.subr.mxu0 0.0
    %1295 = vmatpush1.msra.mxu0 0.0
    %1296 = vmatprep.subr.mxu0 0.0
    %1297 = vmatpush1.msra.mxu0 0.0
    %1298 = vmatprep.subr.mxu0 0.0
    %1299 = vmatpush1.msra.mxu0 0.0
    %1300 = vmatprep.subr.mxu0 0.0
    %1301 = vmatpush1.msra.mxu0 0.0
    %1302 = vmatprep.subr.mxu0 0.0
    %1303 = vmatpush1.msra.mxu0 0.0
    %1304 = vmatprep.subr.mxu0 0.0
    %1305 = vmatpush1.msra.mxu0 0.0
    %1306 = vmatprep.subr.mxu0 0.0
    %1307 = vmatpush1.msra.mxu0 0.0
    %1308 = vmatprep.subr.mxu0 0.0
    %1309 = vmatpush1.msra.mxu0 0.0
    %1310 = vmatprep.subr.mxu0 0.0
    %1311 = vmatpush1.msra.mxu0 0.0
    %1312 = vmatprep.mubr.f32.mxu0 0.0
    %1313 = vmatmul.mubr.f32.gmra.mrb[0].mxu0 %v1242
    %v1314 = vpop.f32.mrb[0].mxu0
    %v1315 = vadd.f32 0.0, %v1314
    %v1316 = vpop.f32.mrb[0].mxu0
    %1317 = vdwg.mxu0
    %v1320 = vunpack.c.l.s4 1966171168
    %v1321 = vunpack.c.0.s8 %v1320
    %v1322 = vlaneseq
    %v1323 = vshrl.u32 %v1322, 7
    %v1324 = vsub.s32 %v1321, %v1323
    %v1325 = vrot.slane %v1315, %v1324
    %v1326 = vcombine.high %v1325, %v1325
    %v1328 = vunpack.c.l.s4 1966171168
    %v1329 = vunpack.c.0.s8 %v1328
    %v1330 = vlaneseq
    %v1331 = vshrl.u32 %v1330, 7
    %v1332 = vsub.s32 %v1329, %v1331
    %v1333 = vrot.slane %v1325, %v1332
    %v1335 = vunpack.c.l.s4 1966171168
    %v1336 = vunpack.c.0.s8 %v1335
    %v1337 = vlaneseq
    %v1338 = vshrl.u32 %v1337, 7
    %v1339 = vsub.s32 %v1336, %v1338
    %v1340 = vrot.slane %v1326, %v1339
    %v1341 = vlaneseq
    %v1342 = vshrl.u32 %v1341, 7
    %v1343 = vsub.s32 0, %v1342
    %v1344 = vrot.slane %v1333, %v1343
    %v1345 = vlaneseq
    %v1346 = vshrl.u32 %v1345, 7
    %v1347 = vsub.s32 0, %v1346
    %v1348 = vrot.slane %v1340, %v1347
    %v1351 = vsub.f32 %v1108, %v1344
    %v1352 = vsub.f32 %v1113, %v1344
    %v1353 = vsub.f32 %v1118, %v1344
    %v1354 = vsub.f32 %v1123, %v1344
    %v1355 = vsub.f32 %v1128, %v1348
    %v1356 = vsub.f32 %v1133, %v1348
    %v1357 = vsub.f32 %v1138, %v1348
    %v1358 = vsub.f32 %v1143, %v1348
    %v1359 = vmul.f32 %v1351, %v1351
    %v1360 = vmul.f32 %v1352, %v1352
    %v1361 = vmul.f32 %v1353, %v1353
    %v1362 = vmul.f32 %v1354, %v1354
    %v1363 = vmul.f32 %v1355, %v1355
    %v1364 = vmul.f32 %v1356, %v1356
    %v1365 = vmul.f32 %v1357, %v1357
    %v1366 = vmul.f32 %v1358, %v1358
    %v1367 = vadd.f32 %v1359, %v1360
    %v1368 = vadd.f32 %v1367, %v1361
    %v1369 = vadd.f32 %v1368, %v1362
    %v1370 = vrot.slane %v1369, 4
    %v1371 = vadd.f32 %v1369, %v1370
    %v1372 = vrot.slane %v1371, 2
    %v1373 = vadd.f32 %v1371, %v1372
    %v1374 = vrot.slane %v1373, 1
    %v1375 = vadd.f32 %v1373, %v1374
    %v1376 = vadd.f32 %v1363, %v1364
    %v1377 = vadd.f32 %v1376, %v1365
    %v1378 = vadd.f32 %v1377, %v1366
    %v1379 = vrot.slane %v1378, 4
    %v1380 = vadd.f32 %v1378, %v1379
    %v1381 = vrot.slane %v1380, 2
    %v1382 = vadd.f32 %v1380, %v1381
    %v1383 = vrot.slane %v1382, 1
    %v1384 = vadd.f32 %v1382, %v1383
    %v1387 = vsel %vm1166, %v1384, %v1375
    %1389 = vmatprep.subr.mxu0 0.0
    %1390 = vmatpush1.msra.mxu0 %v202
    %1391 = vmatprep.subr.mxu0 0.0
    %1392 = vmatpush1.msra.mxu0 %v203
    %1393 = vmatprep.subr.mxu0 0.0
    %1394 = vmatpush1.msra.mxu0 %v204
    %1395 = vmatprep.subr.mxu0 0.0
    %1396 = vmatpush1.msra.mxu0 %v205
    %1397 = vmatprep.subr.mxu0 0.0
    %1398 = vmatpush1.msra.mxu0 %v206
    %1399 = vmatprep.subr.mxu0 0.0
    %1400 = vmatpush1.msra.mxu0 %v207
    %1401 = vmatprep.subr.mxu0 0.0
    %1402 = vmatpush1.msra.mxu0 %v208
    %1403 = vmatprep.subr.mxu0 0.0
    %1404 = vmatpush1.msra.mxu0 %v209
    %1405 = vmatprep.subr.mxu0 0.0
    %1406 = vmatpush1.msra.mxu0 %v210
    %1407 = vmatprep.subr.mxu0 0.0
    %1408 = vmatpush1.msra.mxu0 %v211
    %1409 = vmatprep.subr.mxu0 0.0
    %1410 = vmatpush1.msra.mxu0 %v212
    %1411 = vmatprep.subr.mxu0 0.0
    %1412 = vmatpush1.msra.mxu0 %v213
    %1413 = vmatprep.subr.mxu0 0.0
    %1414 = vmatpush1.msra.mxu0 %v214
    %1415 = vmatprep.subr.mxu0 0.0
    %1416 = vmatpush1.msra.mxu0 %v215
    %1417 = vmatprep.subr.mxu0 0.0
    %1418 = vmatpush1.msra.mxu0 %v216
    %1419 = vmatprep.subr.mxu0 0.0
    %1420 = vmatpush1.msra.mxu0 %v217
    %1421 = vmatprep.subr.mxu0 0.0
    %1422 = vmatpush1.msra.mxu0 0.0
    %1423 = vmatprep.subr.mxu0 0.0
    %1424 = vmatpush1.msra.mxu0 0.0
    %1425 = vmatprep.subr.mxu0 0.0
    %1426 = vmatpush1.msra.mxu0 0.0
    %1427 = vmatprep.subr.mxu0 0.0
    %1428 = vmatpush1.msra.mxu0 0.0
    %1429 = vmatprep.subr.mxu0 0.0
    %1430 = vmatpush1.msra.mxu0 0.0
    %1431 = vmatprep.subr.mxu0 0.0
    %1432 = vmatpush1.msra.mxu0 0.0
    %1433 = vmatprep.subr.mxu0 0.0
    %1434 = vmatpush1.msra.mxu0 0.0
    %1435 = vmatprep.subr.mxu0 0.0
    %1436 = vmatpush1.msra.mxu0 0.0
    %1437 = vmatprep.subr.mxu0 0.0
    %1438 = vmatpush1.msra.mxu0 0.0
    %1439 = vmatprep.subr.mxu0 0.0
    %1440 = vmatpush1.msra.mxu0 0.0
    %1441 = vmatprep.subr.mxu0 0.0
    %1442 = vmatpush1.msra.mxu0 0.0
    %1443 = vmatprep.subr.mxu0 0.0
    %1444 = vmatpush1.msra.mxu0 0.0
    %1445 = vmatprep.subr.mxu0 0.0
    %1446 = vmatpush1.msra.mxu0 0.0
    %1447 = vmatprep.subr.mxu0 0.0
    %1448 = vmatpush1.msra.mxu0 0.0
    %1449 = vmatprep.subr.mxu0 0.0
    %1450 = vmatpush1.msra.mxu0 0.0
    %1451 = vmatprep.subr.mxu0 0.0
    %1452 = vmatpush1.msra.mxu0 0.0
    %1453 = vmatprep.mubr.f32.mxu0 0.0
    %1454 = vmatmul.mubr.f32.gmra.mrb[0].mxu0 %v1387
    %v1455 = vpop.f32.mrb[0].mxu0
    %v1456 = vadd.f32 0.0, %v1455
    %v1457 = vpop.f32.mrb[0].mxu0
    %1458 = vdwg.mxu0
    %v1459 = vmul.f32 %v1456, 0.0009765625
    %v1460 = vadd.f32 %v1459, 1e-05
    %v1461 = vrsqrt.pop %v1460
    %v1463 = vsel %vm1240, %v1461, 0
    %1465 = vmatprep.subr.mxu0 0.0
    %1466 = vmatpush1.msra.mxu0 %v1246
    %1467 = vmatprep.subr.mxu0 0.0
    %1468 = vmatpush1.msra.mxu0 0.0
    %1469 = vmatprep.subr.mxu0 0.0
    %1470 = vmatpush1.msra.mxu0 0.0
    %1471 = vmatprep.subr.mxu0 0.0
    %1472 = vmatpush1.msra.mxu0 0.0
    %1473 = vmatprep.subr.mxu0 0.0
    %1474 = vmatpush1.msra.mxu0 0.0
    %1475 = vmatprep.subr.mxu0 0.0
    %1476 = vmatpush1.msra.mxu0 0.0
    %1477 = vmatprep.subr.mxu0 0.0
    %1478 = vmatpush1.msra.mxu0 0.0
    %1479 = vmatprep.subr.mxu0 0.0
    %1480 = vmatpush1.msra.mxu0 0.0
    %1481 = vmatprep.subr.mxu0 0.0
    %1482 = vmatpush1.msra.mxu0 0.0
    %1483 = vmatprep.subr.mxu0 0.0
    %1484 = vmatpush1.msra.mxu0 0.0
    %1485 = vmatprep.subr.mxu0 0.0
    %1486 = vmatpush1.msra.mxu0 0.0
    %1487 = vmatprep.subr.mxu0 0.0
    %1488 = vmatpush1.msra.mxu0 0.0
    %1489 = vmatprep.subr.mxu0 0.0
    %1490 = vmatpush1.msra.mxu0 0.0
    %1491 = vmatprep.subr.mxu0 0.0
    %1492 = vmatpush1.msra.mxu0 0.0
    %1493 = vmatprep.subr.mxu0 0.0
    %1494 = vmatpush1.msra.mxu0 0.0
    %1495 = vmatprep.subr.mxu0 0.0
    %1496 = vmatpush1.msra.mxu0 0.0
    %1497 = vmatprep.subr.mxu0 0.0
    %1498 = vmatpush1.msra.mxu0 0.0
    %1499 = vmatprep.subr.mxu0 0.0
    %1500 = vmatpush1.msra.mxu0 0.0
    %1501 = vmatprep.subr.mxu0 0.0
    %1502 = vmatpush1.msra.mxu0 0.0
    %1503 = vmatprep.subr.mxu0 0.0
    %1504 = vmatpush1.msra.mxu0 0.0
    %1505 = vmatprep.subr.mxu0 0.0
    %1506 = vmatpush1.msra.mxu0 0.0
    %1507 = vmatprep.subr.mxu0 0.0
    %1508 = vmatpush1.msra.mxu0 0.0
    %1509 = vmatprep.subr.mxu0 0.0
    %1510 = vmatpush1.msra.mxu0 0.0
    %1511 = vmatprep.subr.mxu0 0.0
    %1512 = vmatpush1.msra.mxu0 0.0
    %1513 = vmatprep.subr.mxu0 0.0
    %1514 = vmatpush1.msra.mxu0 0.0
    %1515 = vmatprep.subr.mxu0 0.0
    %1516 = vmatpush1.msra.mxu0 0.0
    %1517 = vmatprep.subr.mxu0 0.0
    %1518 = vmatpush1.msra.mxu0 0.0
    %1519 = vmatprep.subr.mxu0 0.0
    %1520 = vmatpush1.msra.mxu0 0.0
    %1521 = vmatprep.subr.mxu0 0.0
    %1522 = vmatpush1.msra.mxu0 0.0
    %1523 = vmatprep.subr.mxu0 0.0
    %1524 = vmatpush1.msra.mxu0 0.0
    %1525 = vmatprep.subr.mxu0 0.0
    %1526 = vmatpush1.msra.mxu0 0.0
    %1527 = vmatprep.subr.mxu0 0.0
    %1528 = vmatpush1.msra.mxu0 0.0
    %1529 = vmatprep.mubr.f32.mxu0 0.0
    %1530 = vmatmul.mubr.f32.gmra.mrb[0].mxu0 %v1463
    %v1531 = vpop.f32.mrb[0].mxu0
    %v1532 = vadd.f32 0.0, %v1531
    %v1533 = vpop.f32.mrb[0].mxu0
    %1534 = vdwg.mxu0
    %v1536 = vlaneseq
    %v1537 = vshrl.u32 %v1536, 7
    %v1538 = vsub.s32 0, %v1537
    %v1539 = vrot.slane %v219, %v1538
    %v1541 = vmul.f32 %v1532, %v1539
    %v1544 = vunpack.c.l.s4 1966171168
    %v1545 = vunpack.c.0.s8 %v1544
    %v1546 = vlaneseq
    %v1547 = vshrl.u32 %v1546, 7
    %v1548 = vsub.s32 %v1545, %v1547
    %v1549 = vrot.slane %v1541, %v1548
    %v1550 = vcombine.high %v1549, %v1549
    %v1552 = vunpack.c.l.s4 1966171168
    %v1553 = vunpack.c.0.s8 %v1552
    %v1554 = vlaneseq
    %v1555 = vshrl.u32 %v1554, 7
    %v1556 = vsub.s32 %v1553, %v1555
    %v1557 = vrot.slane %v1549, %v1556
    %v1559 = vunpack.c.l.s4 1966171168
    %v1560 = vunpack.c.0.s8 %v1559
    %v1561 = vlaneseq
    %v1562 = vshrl.u32 %v1561, 7
    %v1563 = vsub.s32 %v1560, %v1562
    %v1564 = vrot.slane %v1550, %v1563
    %v1565 = vlaneseq
    %v1566 = vshrl.u32 %v1565, 7
    %v1567 = vsub.s32 0, %v1566
    %v1568 = vrot.slane %v1557, %v1567
    %v1569 = vlaneseq
    %v1570 = vshrl.u32 %v1569, 7
    %v1571 = vsub.s32 0, %v1570
    %v1572 = vrot.slane %v1564, %v1571
    %v1575 = vmul.f32 %v1351, %v1568
    %v1576 = vmul.f32 %v1352, %v1568
    %v1577 = vmul.f32 %v1353, %v1568
    %v1578 = vmul.f32 %v1354, %v1568
    %v1579 = vmul.f32 %v1355, %v1572
    %v1580 = vmul.f32 %v1356, %v1572
    %v1581 = vmul.f32 %v1357, %v1572
    %v1582 = vmul.f32 %v1358, %v1572
    %v1584 = vlaneseq
    %v1585 = vshrl.u32 %v1584, 7
    %v1586 = vsub.s32 0, %v1585
    %v1587 = vrot.slane %v220, %v1586
    %v1589 = vadd.f32 %v1575, %v1587
    %v1590 = vadd.f32 %v1576, %v1587
    %v1591 = vadd.f32 %v1577, %v1587
    %v1592 = vadd.f32 %v1578, %v1587
    %v1593 = vadd.f32 %v1579, %v1587
    %v1594 = vadd.f32 %v1580, %v1587
    %v1595 = vadd.f32 %v1581, %v1587
    %v1596 = vadd.f32 %v1582, %v1587
    %v1597 = vmax.f32 %v1589, 0.0
    %v1598 = vmax.f32 %v1590, 0.0
    %v1599 = vmax.f32 %v1591, 0.0
    %v1600 = vmax.f32 %v1592, 0.0
    %v1601 = vmax.f32 %v1593, 0.0
    %v1602 = vmax.f32 %v1594, 0.0
    %v1603 = vmax.f32 %v1595, 0.0
    %v1604 = vmax.f32 %v1596, 0.0
    %1605 = vst [vmem:[#allocation5] sm:$0xff] %v1597
    %1606 = vst [vmem:[#allocation5 + $0x8] sm:$0xff] %v1598
    %1607 = vst [vmem:[#allocation5 + $0x10] sm:$0xff] %v1599
    %1608 = vst [vmem:[#allocation5 + $0x18] sm:$0xff] %v1600
    %1609 = vst [vmem:[#allocation5 + $0x20] sm:$0xff] %v1601
    %1610 = vst [vmem:[#allocation5 + $0x28] sm:$0xff] %v1602
    %1611 = vst [vmem:[#allocation5 + $0x30] sm:$0xff] %v1603
    %1612 = vst [vmem:[#allocation5 + $0x38] sm:$0xff] %v1604
    // Predicated region
    $region30: #{tpu_custom_call.1} parent=1 // pred_check
      _
    $region31: #{tpu_custom_call.1} parent=1 // pred_check_branch
      %1614 = sbr.rel (0) target = $region33
    $region32: #{tpu_custom_call.1} parent=1 // pred_region
      %s1616 = ssub.s32 1024, 1024
      %1617 = vsyncadd [#allocation4], %s1616
      %s1618 = sshll.u32 [#allocation5], 4
      %s1619 = int_to_ptr.vmem [resolvable:$true] %s1618
      %1624 = dma.vmem_to_hbm [thread:$0]  %s1619, 1024, %s6, [#allocation4], 128, 128, 8
    $region33: #{tpu_custom_call.1} parent=1 // pred_fallthru
      _
    // Predicated region
    $region34: #{tpu_custom_call.1} parent=1 // pred_check
      _
    $region35: #{tpu_custom_call.1} parent=1 // pred_check_branch
      %1626 = sbr.rel (0) target = $region37
    $region36: #{tpu_custom_call.1} parent=1 // pred_region
      %1627 = dma.done [#allocation4], 1024
    $region37: #{tpu_custom_call.1} parent=1 // pred_fallthru
      _
    %1628 = vsyncpa [#allocation3], 1
    %1629 = vsyncpa [#allocation4], 1

</llo_original>
